<compile_context>
chip_gen: v7x
topology: tpu7x:2x2x1
jax: 0.10.0
libtpu: 0.0.40
codegen_flags: <defaults>
</compile_context>

<pallas_src>
import numpy as np
import jax
import jax.numpy as jnp
from jax.experimental import pallas as pl
from jax.experimental.pallas import tpu as pltpu


def _round_up(x, m):
    return -(-x // m) * m


def _padded_bytes(shape, itemsize=4):
    """Approximate VMEM footprint: last dim padded to 128 lanes, 2nd-last to 8 sublanes."""
    s = list(shape)
    s[-1] = _round_up(s[-1], 128)
    if len(s) >= 2:
        s[-2] = _round_up(s[-2], 8)
    return int(np.prod(s)) * itemsize


# ----------------------------------------------------------------------------
# MADE mask construction (numpy glue; masks are baked into the weights).
# ----------------------------------------------------------------------------
def make_made_masks(input_order, n_hidden_layers, n_hidden_units):
    """Standard MADE degrees ('sequential' hidden order).

    Returns (hidden_masks, out_mask):
      hidden_masks[0]  : [D, H]   input  -> hidden
      hidden_masks[j]  : [H, H]   hidden -> hidden   (j = 1..n_hidden_layers-1)
      out_mask         : [H, D]   hidden -> output head (strict), shared by the
                                  `a` head and the `log_b` head.
    """
    input_order = np.asarray(input_order)
    D = input_order.shape[0]
    H = n_hidden_units
    degrees = [input_order]
    for _ in range(n_hidden_layers):
        degrees.append(np.arange(H) % max(1, D - 1) + 1)
    masks = []
    for l in range(n_hidden_layers):
        m_in, m_out = degrees[l], degrees[l + 1]
        masks.append((m_out[None, :] >= m_in[:, None]).astype(np.float32))
    out_mask = (input_order[None, :] > degrees[-1][:, None]).astype(np.float32)
    return masks, out_mask


# ----------------------------------------------------------------------------
# Parameter init: weights are pre-masked and stacked across flow layers.
# (Natural [in, out] orientation; flow_forward packs them into kernel layout.)
# ----------------------------------------------------------------------------
def init_flow_params(key, data_dim, n_hidden_layers, n_hidden_units,
                     num_flow_layers, reverse_between_layers=True,
                     reverse_first_layer=False):
    D, H, L = data_dim, n_hidden_units, num_flow_layers
    input_order = np.arange(1, D + 1)
    if reverse_first_layer:
        input_order = input_order[::-1].copy()

    w0s, b0s, whs, bhs, was, bas, wbs, bbs = [], [], [], [], [], [], [], []
    for _ in range(L):
        hmasks, out_mask = make_made_masks(input_order, n_hidden_layers, H)

        # input -> hidden
        key, kw, kb = jax.random.split(key, 3)
        w0s.append(jnp.asarray(hmasks[0]) *
                   jax.random.normal(kw, (D, H), jnp.float32) / np.sqrt(D))
        b0s.append(0.01 * jax.random.normal(kb, (1, H), jnp.float32))

        # hidden -> hidden
        wl, bl = [], []
        for j in range(1, n_hidden_layers):
            key, kw, kb = jax.random.split(key, 3)
            wl.append(jnp.asarray(hmasks[j]) *
                      jax.random.normal(kw, (H, H), jnp.float32) / np.sqrt(H))
            bl.append(0.01 * jax.random.normal(kb, (1, H), jnp.float32))
        if n_hidden_layers > 1:
            whs.append(jnp.stack(wl))          # [nh-1, H, H]
            bhs.append(jnp.stack(bl))          # [nh-1, 1, H]

        # hidden -> output: separate `a` head and `log_b` head (masked identically)
        key, kwa, kba, kwb, kbb = jax.random.split(key, 5)
        m = jnp.asarray(out_mask)
        was.append(m * jax.random.normal(kwa, (H, D), jnp.float32) / np.sqrt(H))
        bas.append(0.01 * jax.random.normal(kba, (1, D), jnp.float32))
        wbs.append(m * jax.random.normal(kwb, (H, D), jnp.float32) / np.sqrt(H))
        bbs.append(0.01 * jax.random.normal(kbb, (1, D), jnp.float32))

        if reverse_between_layers:
            input_order = input_order[::-1].copy()

    return dict(
        w0=jnp.stack(w0s),                                    # [L, D, H]
        b0=jnp.stack(b0s),                                    # [L, 1, H]
        wh=(jnp.stack(whs) if n_hidden_layers > 1 else None), # [L, nh-1, H, H]
        bh=(jnp.stack(bhs) if n_hidden_layers > 1 else None), # [L, nh-1, 1, H]
        wa=jnp.stack(was), ba=jnp.stack(bas),                 # [L, H, D], [L, 1, D]
        wb=jnp.stack(wbs), bb=jnp.stack(bbs),                 # [L, H, D], [L, 1, D]
    )


# ----------------------------------------------------------------------------
# Fused Pallas kernel: all flow layers in one pass, batch on lanes,
# x / logdet kept on-chip and written back exactly once.
# ----------------------------------------------------------------------------
def make_flow_kernel(num_flow_layers, n_hidden_layers, data_dim, n_hidden_units):
    has_hidden = n_hidden_layers > 1
    D, H = data_dim, n_hidden_units

    # TODO(synk): for num_flow_layers / n_hidden_layers beyond a handful, switch
    #             these static python loops to lax.fori_loop over the resident
    #             stacked weights to bound vreg live ranges and compile time.
    def kernel(*refs):
        if has_hidden:
            yT_ref, w0t_ref, wht_ref, wheadt_ref, bias_ref, xT_ref, ld_ref = refs
        else:
            yT_ref, w0t_ref, wheadt_ref, bias_ref, xT_ref, ld_ref = refs

        xT = yT_ref[...]                                    # [D, tb]  batch on lanes
        logdet = jnp.zeros((1, xT.shape[1]), jnp.float32)   # [1, tb]

        for l in range(num_flow_layers):                    # static unroll (L small)
            b_l = bias_ref[l, :, :]                         # [NB, 1] packed biases

            # input -> hidden: h^T = tanh(W0^T @ x^T + b0^T)
            h = jnp.tanh(
                jnp.dot(w0t_ref[l, :, :], xT, preferred_element_type=jnp.float32)
                + b_l[0:H])
            if has_hidden:
                for j in range(n_hidden_layers - 1):
                    h = jnp.tanh(
                        jnp.dot(wht_ref[l, j, :, :], h,
                                preferred_element_type=jnp.float32)
                        + b_l[H + j * H:H + (j + 1) * H])

            # Stacked output head: rows [0:D] -> a^T, rows [D:2D] -> log_b^T.
            head = (jnp.dot(wheadt_ref[l, :, :], h,
                            preferred_element_type=jnp.float32)
                    + b_l[n_hidden_layers * H:n_hidden_layers * H + 2 * D])
            a = head[:D]                                    # free slice at sublane D
            log_b = head[D:2 * D]

            xT = (xT - a) * jnp.exp(-log_b)
            logdet = logdet + jnp.sum(log_b, axis=0, keepdims=True)

        xT_ref[...] = xT          # lane-dense (D, tb) store, single HBM writeback
        ld_ref[...] = logdet      # lane-dense (1, tb) store

    return kernel


def flow_forward(y, params, *, tb=None):
    """Matches Flow.forward: returns (x, logdet) with logdet shape y.shape[:-1]."""
    B, D = y.shape
    L, _, H = params["w0"].shape
    nh = 1 + (params["wh"].shape[1] if params["wh"] is not None else 0)

    # ---- Pack weights into the transposed (batch-on-lanes) kernel layout. ------
    w0t = jnp.transpose(params["w0"], (0, 2, 1))                      # [L, H, D]
    wht = (jnp.transpose(params["wh"], (0, 1, 3, 2))
           if params["wh"] is not None else None)                     # [L, nh-1, H, H]
    wheadt = jnp.concatenate(
        [jnp.transpose(params["wa"], (0, 2, 1)),
         jnp.transpose(params["wb"], (0, 2, 1))], axis=1)             # [L, 2D, H]
    bias_rows = [jnp.transpose(params["b0"], (0, 2, 1))]              # [L, H, 1]
    if params["bh"] is not None:
        bias_rows.append(
            jnp.transpose(params["bh"], (0, 1, 3, 2)).reshape(L, (nh - 1) * H, 1))
    bias_rows.append(jnp.transpose(params["ba"], (0, 2, 1)))          # [L, D, 1]
    bias_rows.append(jnp.transpose(params["bb"], (0, 2, 1)))          # [L, D, 1]
    biasP = jnp.concatenate(bias_rows, axis=1)                        # [L, NB, 1]

    # ---- Batch tiling: batch is the LANE axis -> tiles are multiples of 128. ---
    if tb is None:
        groups = -(-B // 128)
        # Up to 512 lanes/tile for HBM-roofline efficiency, but keep >=2 grid
        # steps when the batch allows so both v7x TensorCores get work.
        tb = 128 * max(1, min(4, groups // 2))
    tb = max(128, _round_up(int(tb), 128))
    Bp = _round_up(B, tb)

    yT = jnp.transpose(y)                                             # [D, B]
    if Bp != B:
        yT = jnp.pad(yT, ((0, 0), (0, Bp - B)))

    kernel = make_flow_kernel(L, nh, D, H)

    def const_spec(shape):      # full-array block, resident across the batch grid
        nd = len(shape)
        return pl.BlockSpec(shape, lambda i, _nd=nd: (0,) * _nd)

    in_specs = [pl.BlockSpec((D, tb), lambda i: (0, i)), const_spec(w0t.shape)]
    args = [yT, w0t]
    if wht is not None:
        in_specs.append(const_spec(wht.shape))
        args.append(wht)
    in_specs += [const_spec(wheadt.shape), const_spec(biasP.shape)]
    args += [wheadt, biasP]

    out_specs = (pl.BlockSpec((D, tb), lambda i: (0, i)),
                 pl.BlockSpec((1, tb), lambda i: (0, i)))
    out_shape = (jax.ShapeDtypeStruct((D, Bp), jnp.float32),
                 jax.ShapeDtypeStruct((1, Bp), jnp.float32))

    # Tight VMEM budget: resident weights (x2 buffering) + double-buffered I/O
    # tiles + headroom for compiler scratch.  No 32 MiB floor, no 4x fudge.
    weight_bytes = sum(_padded_bytes(a.shape) for a in args[1:])
    io_bytes = 2 * (2 * _padded_bytes((D, tb)) + _padded_bytes((1, tb)))
    vmem_limit = int(min(32 << 20, 2 * weight_bytes + io_bytes + (8 << 20)))

    xT, ld = pl.pallas_call(
        kernel,
        grid=(Bp // tb,),
        in_specs=in_specs,
        out_specs=out_specs,
        out_shape=out_shape,
        compiler_params=pltpu.CompilerParams(
            dimension_semantics=("parallel",),
            vmem_limit_bytes=vmem_limit),
    )(*args)

    return jnp.transpose(xT)[:B], ld[0, :B]


# ----------------------------------------------------------------------------
# Pure-JAX reference for correctness checking (natural layout).
# ----------------------------------------------------------------------------
def flow_forward_ref(y, params):
    B, D = y.shape
    L = params["w0"].shape[0]
    nh_minus1 = params["wh"].shape[1] if params["wh"] is not None else 0
    logdet = jnp.zeros((B,), jnp.float32)
    x = y
    for l in range(L):
        h = jnp.tanh(x @ params["w0"][l] + params["b0"][l])
        for j in range(nh_minus1):
            h = jnp.tanh(h @ params["wh"][l, j] + params["bh"][l, j])
        a = h @ params["wa"][l] + params["ba"][l]
        log_b = h @ params["wb"][l] + params["bb"][l]
        x = (x - a) * jnp.exp(-log_b)
        logdet = logdet + jnp.sum(log_b, axis=-1)
    return x, logdet


if __name__ == "__main__":
    # Small, module-consistent shapes: data_dim=8, hidden=32, 2 hidden layers,
    # 3 flow layers.  B=256 -> auto lane-tile 128 -> 2 parallel grid steps.
    B, D, H = 256, 8, 32
    n_hidden_layers, num_flow_layers = 2, 3

    key = jax.random.PRNGKey(0)
    key, k_y, k_p = jax.random.split(key, 3)
    y = jax.random.normal(k_y, (B, D), jnp.float32)
    params = init_flow_params(k_p, D, n_hidden_layers, H, num_flow_layers)

    x, logdet = flow_forward(y, params)
    jax.block_until_ready((x, logdet))
    x_ref, logdet_ref = flow_forward_ref(y, params)
    np.testing.assert_allclose(np.asarray(x), np.asarray(x_ref), rtol=5e-5, atol=5e-5)
    np.testing.assert_allclose(np.asarray(logdet), np.asarray(logdet_ref),
                               rtol=5e-5, atol=5e-5)
    assert x.shape == (B, D) and logdet.shape == (B,)

    # Non-divisible batch (lane padding) path.
    y2 = jax.random.normal(jax.random.PRNGKey(1), (100, D), jnp.float32)
    x2, logdet2 = flow_forward(y2, params)
    jax.block_until_ready((x2, logdet2))
    x2_ref, logdet2_ref = flow_forward_ref(y2, params)
    np.testing.assert_allclose(np.asarray(x2), np.asarray(x2_ref), rtol=5e-5, atol=5e-5)
    np.testing.assert_allclose(np.asarray(logdet2), np.asarray(logdet2_ref),
                               rtol=5e-5, atol=5e-5)
    assert x2.shape == (100, D) and logdet2.shape == (100,)

    # Single-hidden-layer MADE (no hidden->hidden weights) path.
    params1 = init_flow_params(jax.random.PRNGKey(2), D, 1, H, 2)
    x3, logdet3 = flow_forward(y, params1)
    jax.block_until_ready((x3, logdet3))
    x3_ref, logdet3_ref = flow_forward_ref(y, params1)
    np.testing.assert_allclose(np.asarray(x3), np.asarray(x3_ref), rtol=5e-5, atol=5e-5)
    np.testing.assert_allclose(np.asarray(logdet3), np.asarray(logdet3_ref),
                               rtol=5e-5, atol=5e-5)

    print("KERNEL_OK")
</pallas_src>

<mosaic_0001>
module attributes {stable_mosaic.version = 11 : i64} {
  func.func @kernel(%arg0: i32, %arg1: memref<8x128xf32, #tpu.memory_space<vmem>>, %arg2: memref<3x32x8xf32, #tpu.memory_space<vmem>>, %arg3: memref<3x1x32x32xf32, #tpu.memory_space<vmem>>, %arg4: memref<3x16x32xf32, #tpu.memory_space<vmem>>, %arg5: memref<3x80x1xf32, #tpu.memory_space<vmem>>, %arg6: memref<8x128xf32, #tpu.memory_space<vmem>>, %arg7: memref<1x128xf32, #tpu.memory_space<vmem>>) attributes {dimension_semantics = [#tpu.dimension_semantics<parallel>], iteration_bounds = array<i64: 2>, scalar_prefetch = 0 : i64, scratch_operands = 0 : i64, tpu.core_type = #tpu.core_type<tc>, window_params = [{transform_indices = @transform_0, window_bounds = array<i64: 8, 128>}, {pipeline_mode = #tpu.pipeline_mode<synchronous>, transform_indices = @transform_1, window_bounds = array<i64: 3, 32, 8>}, {pipeline_mode = #tpu.pipeline_mode<synchronous>, transform_indices = @transform_2, window_bounds = array<i64: 3, 1, 32, 32>}, {pipeline_mode = #tpu.pipeline_mode<synchronous>, transform_indices = @transform_3, window_bounds = array<i64: 3, 16, 32>}, {pipeline_mode = #tpu.pipeline_mode<synchronous>, transform_indices = @transform_4, window_bounds = array<i64: 3, 80, 1>}, {transform_indices = @transform_5, window_bounds = array<i64: 8, 128>}, {transform_indices = @transform_6, window_bounds = array<i64: 1, 128>}]} {
    %c0 = arith.constant 0 : index
    %c0_0 = arith.constant 0 : index
    %0 = vector.load %arg1[%c0, %c0_0] : memref<8x128xf32, #tpu.memory_space<vmem>>, vector<8x128xf32>
    %cst = arith.constant 0.000000e+00 : f32
    %1 = vector.broadcast %cst : f32 to vector<1x128xf32>
    %c0_1 = arith.constant 0 : index
    %c0_2 = arith.constant 0 : index
    %c0_3 = arith.constant 0 : index
    %2 = vector.load %arg5[%c0_1, %c0_2, %c0_3] : memref<3x80x1xf32, #tpu.memory_space<vmem>>, vector<1x80x1xf32>
    %3 = vector.shape_cast %2 : vector<1x80x1xf32> to vector<80x1xf32>
    %c0_4 = arith.constant 0 : index
    %c0_5 = arith.constant 0 : index
    %c0_6 = arith.constant 0 : index
    %4 = vector.load %arg2[%c0_4, %c0_5, %c0_6] : memref<3x32x8xf32, #tpu.memory_space<vmem>>, vector<1x32x8xf32>
    %5 = vector.shape_cast %4 : vector<1x32x8xf32> to vector<32x8xf32>
    %cst_7 = arith.constant dense<0.000000e+00> : vector<32x128xf32>
    %6 = tpu.matmul %5, %0, %cst_7 {dimension_numbers = #tpu.dot_dimension_numbers<[1], [0], [0], [1], [0, 0, 1, 1], [], []>} : vector<32x8xf32>, vector<8x128xf32>, vector<32x128xf32> -> vector<32x128xf32>
    %7 = vector.extract_strided_slice %3 {offsets = [0, 0], sizes = [32, 1], strides = [1, 1]} : vector<80x1xf32> to vector<32x1xf32>
    %8 = vector.broadcast %7 : vector<32x1xf32> to vector<32x128xf32>
    %9 = arith.addf %6, %8 : vector<32x128xf32>
    %10 = math.tanh %9 : vector<32x128xf32>
    %c0_8 = arith.constant 0 : index
    %c0_9 = arith.constant 0 : index
    %c0_10 = arith.constant 0 : index
    %c0_11 = arith.constant 0 : index
    %11 = vector.load %arg3[%c0_8, %c0_9, %c0_10, %c0_11] : memref<3x1x32x32xf32, #tpu.memory_space<vmem>>, vector<1x1x32x32xf32>
    %12 = vector.shape_cast %11 : vector<1x1x32x32xf32> to vector<32x32xf32>
    %cst_12 = arith.constant dense<0.000000e+00> : vector<32x128xf32>
    %13 = tpu.matmul %12, %10, %cst_12 {dimension_numbers = #tpu.dot_dimension_numbers<[1], [0], [0], [1], [0, 0, 1, 1], [], []>} : vector<32x32xf32>, vector<32x128xf32>, vector<32x128xf32> -> vector<32x128xf32>
    %14 = vector.extract_strided_slice %3 {offsets = [32, 0], sizes = [32, 1], strides = [1, 1]} : vector<80x1xf32> to vector<32x1xf32>
    %15 = vector.broadcast %14 : vector<32x1xf32> to vector<32x128xf32>
    %16 = arith.addf %13, %15 : vector<32x128xf32>
    %17 = math.tanh %16 : vector<32x128xf32>
    %c0_13 = arith.constant 0 : index
    %c0_14 = arith.constant 0 : index
    %c0_15 = arith.constant 0 : index
    %18 = vector.load %arg4[%c0_13, %c0_14, %c0_15] : memref<3x16x32xf32, #tpu.memory_space<vmem>>, vector<1x16x32xf32>
    %19 = vector.shape_cast %18 : vector<1x16x32xf32> to vector<16x32xf32>
    %cst_16 = arith.constant dense<0.000000e+00> : vector<16x128xf32>
    %20 = tpu.matmul %19, %17, %cst_16 {dimension_numbers = #tpu.dot_dimension_numbers<[1], [0], [0], [1], [0, 0, 1, 1], [], []>} : vector<16x32xf32>, vector<32x128xf32>, vector<16x128xf32> -> vector<16x128xf32>
    %21 = vector.extract_strided_slice %3 {offsets = [64, 0], sizes = [16, 1], strides = [1, 1]} : vector<80x1xf32> to vector<16x1xf32>
    %22 = vector.broadcast %21 : vector<16x1xf32> to vector<16x128xf32>
    %23 = arith.addf %20, %22 : vector<16x128xf32>
    %24 = vector.extract_strided_slice %23 {offsets = [0, 0], sizes = [8, 128], strides = [1, 1]} : vector<16x128xf32> to vector<8x128xf32>
    %25 = vector.extract_strided_slice %23 {offsets = [8, 0], sizes = [8, 128], strides = [1, 1]} : vector<16x128xf32> to vector<8x128xf32>
    %26 = arith.subf %0, %24 : vector<8x128xf32>
    %cst_17 = arith.constant 0.000000e+00 : f32
    %27 = vector.broadcast %cst_17 : f32 to vector<8x128xf32>
    %28 = arith.subf %27, %25 : vector<8x128xf32>
    %29 = math.exp %28 : vector<8x128xf32>
    %30 = arith.mulf %26, %29 : vector<8x128xf32>
    %cst_18 = arith.constant dense<0.000000e+00> : vector<128xf32>
    %31 = vector.multi_reduction <add>, %25, %cst_18 [0] : vector<8x128xf32> to vector<128xf32>
    %32 = vector.shape_cast %31 : vector<128xf32> to vector<1x128xf32>
    %33 = arith.addf %1, %32 : vector<1x128xf32>
    %c1 = arith.constant 1 : index
    %c0_19 = arith.constant 0 : index
    %c0_20 = arith.constant 0 : index
    %34 = vector.load %arg5[%c1, %c0_19, %c0_20] : memref<3x80x1xf32, #tpu.memory_space<vmem>>, vector<1x80x1xf32>
    %35 = vector.shape_cast %34 : vector<1x80x1xf32> to vector<80x1xf32>
    %c1_21 = arith.constant 1 : index
    %c0_22 = arith.constant 0 : index
    %c0_23 = arith.constant 0 : index
    %36 = vector.load %arg2[%c1_21, %c0_22, %c0_23] : memref<3x32x8xf32, #tpu.memory_space<vmem>>, vector<1x32x8xf32>
    %37 = vector.shape_cast %36 : vector<1x32x8xf32> to vector<32x8xf32>
    %cst_24 = arith.constant dense<0.000000e+00> : vector<32x128xf32>
    %38 = tpu.matmul %37, %30, %cst_24 {dimension_numbers = #tpu.dot_dimension_numbers<[1], [0], [0], [1], [0, 0, 1, 1], [], []>} : vector<32x8xf32>, vector<8x128xf32>, vector<32x128xf32> -> vector<32x128xf32>
    %39 = vector.extract_strided_slice %35 {offsets = [0, 0], sizes = [32, 1], strides = [1, 1]} : vector<80x1xf32> to vector<32x1xf32>
    %40 = vector.broadcast %39 : vector<32x1xf32> to vector<32x128xf32>
    %41 = arith.addf %38, %40 : vector<32x128xf32>
    %42 = math.tanh %41 : vector<32x128xf32>
    %c1_25 = arith.constant 1 : index
    %c0_26 = arith.constant 0 : index
    %c0_27 = arith.constant 0 : index
    %c0_28 = arith.constant 0 : index
    %43 = vector.load %arg3[%c1_25, %c0_26, %c0_27, %c0_28] : memref<3x1x32x32xf32, #tpu.memory_space<vmem>>, vector<1x1x32x32xf32>
    %44 = vector.shape_cast %43 : vector<1x1x32x32xf32> to vector<32x32xf32>
    %cst_29 = arith.constant dense<0.000000e+00> : vector<32x128xf32>
    %45 = tpu.matmul %44, %42, %cst_29 {dimension_numbers = #tpu.dot_dimension_numbers<[1], [0], [0], [1], [0, 0, 1, 1], [], []>} : vector<32x32xf32>, vector<32x128xf32>, vector<32x128xf32> -> vector<32x128xf32>
    %46 = vector.extract_strided_slice %35 {offsets = [32, 0], sizes = [32, 1], strides = [1, 1]} : vector<80x1xf32> to vector<32x1xf32>
    %47 = vector.broadcast %46 : vector<32x1xf32> to vector<32x128xf32>
    %48 = arith.addf %45, %47 : vector<32x128xf32>
    %49 = math.tanh %48 : vector<32x128xf32>
    %c1_30 = arith.constant 1 : index
    %c0_31 = arith.constant 0 : index
    %c0_32 = arith.constant 0 : index
    %50 = vector.load %arg4[%c1_30, %c0_31, %c0_32] : memref<3x16x32xf32, #tpu.memory_space<vmem>>, vector<1x16x32xf32>
    %51 = vector.shape_cast %50 : vector<1x16x32xf32> to vector<16x32xf32>
    %cst_33 = arith.constant dense<0.000000e+00> : vector<16x128xf32>
    %52 = tpu.matmul %51, %49, %cst_33 {dimension_numbers = #tpu.dot_dimension_numbers<[1], [0], [0], [1], [0, 0, 1, 1], [], []>} : vector<16x32xf32>, vector<32x128xf32>, vector<16x128xf32> -> vector<16x128xf32>
    %53 = vector.extract_strided_slice %35 {offsets = [64, 0], sizes = [16, 1], strides = [1, 1]} : vector<80x1xf32> to vector<16x1xf32>
    %54 = vector.broadcast %53 : vector<16x1xf32> to vector<16x128xf32>
    %55 = arith.addf %52, %54 : vector<16x128xf32>
    %56 = vector.extract_strided_slice %55 {offsets = [0, 0], sizes = [8, 128], strides = [1, 1]} : vector<16x128xf32> to vector<8x128xf32>
    %57 = vector.extract_strided_slice %55 {offsets = [8, 0], sizes = [8, 128], strides = [1, 1]} : vector<16x128xf32> to vector<8x128xf32>
    %58 = arith.subf %30, %56 : vector<8x128xf32>
    %cst_34 = arith.constant 0.000000e+00 : f32
    %59 = vector.broadcast %cst_34 : f32 to vector<8x128xf32>
    %60 = arith.subf %59, %57 : vector<8x128xf32>
    %61 = math.exp %60 : vector<8x128xf32>
    %62 = arith.mulf %58, %61 : vector<8x128xf32>
    %cst_35 = arith.constant dense<0.000000e+00> : vector<128xf32>
    %63 = vector.multi_reduction <add>, %57, %cst_35 [0] : vector<8x128xf32> to vector<128xf32>
    %64 = vector.shape_cast %63 : vector<128xf32> to vector<1x128xf32>
    %65 = arith.addf %33, %64 : vector<1x128xf32>
    %c2 = arith.constant 2 : index
    %c0_36 = arith.constant 0 : index
    %c0_37 = arith.constant 0 : index
    %66 = vector.load %arg5[%c2, %c0_36, %c0_37] : memref<3x80x1xf32, #tpu.memory_space<vmem>>, vector<1x80x1xf32>
    %67 = vector.shape_cast %66 : vector<1x80x1xf32> to vector<80x1xf32>
    %c2_38 = arith.constant 2 : index
    %c0_39 = arith.constant 0 : index
    %c0_40 = arith.constant 0 : index
    %68 = vector.load %arg2[%c2_38, %c0_39, %c0_40] : memref<3x32x8xf32, #tpu.memory_space<vmem>>, vector<1x32x8xf32>
    %69 = vector.shape_cast %68 : vector<1x32x8xf32> to vector<32x8xf32>
    %cst_41 = arith.constant dense<0.000000e+00> : vector<32x128xf32>
    %70 = tpu.matmul %69, %62, %cst_41 {dimension_numbers = #tpu.dot_dimension_numbers<[1], [0], [0], [1], [0, 0, 1, 1], [], []>} : vector<32x8xf32>, vector<8x128xf32>, vector<32x128xf32> -> vector<32x128xf32>
    %71 = vector.extract_strided_slice %67 {offsets = [0, 0], sizes = [32, 1], strides = [1, 1]} : vector<80x1xf32> to vector<32x1xf32>
    %72 = vector.broadcast %71 : vector<32x1xf32> to vector<32x128xf32>
    %73 = arith.addf %70, %72 : vector<32x128xf32>
    %74 = math.tanh %73 : vector<32x128xf32>
    %c2_42 = arith.constant 2 : index
    %c0_43 = arith.constant 0 : index
    %c0_44 = arith.constant 0 : index
    %c0_45 = arith.constant 0 : index
    %75 = vector.load %arg3[%c2_42, %c0_43, %c0_44, %c0_45] : memref<3x1x32x32xf32, #tpu.memory_space<vmem>>, vector<1x1x32x32xf32>
    %76 = vector.shape_cast %75 : vector<1x1x32x32xf32> to vector<32x32xf32>
    %cst_46 = arith.constant dense<0.000000e+00> : vector<32x128xf32>
    %77 = tpu.matmul %76, %74, %cst_46 {dimension_numbers = #tpu.dot_dimension_numbers<[1], [0], [0], [1], [0, 0, 1, 1], [], []>} : vector<32x32xf32>, vector<32x128xf32>, vector<32x128xf32> -> vector<32x128xf32>
    %78 = vector.extract_strided_slice %67 {offsets = [32, 0], sizes = [32, 1], strides = [1, 1]} : vector<80x1xf32> to vector<32x1xf32>
    %79 = vector.broadcast %78 : vector<32x1xf32> to vector<32x128xf32>
    %80 = arith.addf %77, %79 : vector<32x128xf32>
    %81 = math.tanh %80 : vector<32x128xf32>
    %c2_47 = arith.constant 2 : index
    %c0_48 = arith.constant 0 : index
    %c0_49 = arith.constant 0 : index
    %82 = vector.load %arg4[%c2_47, %c0_48, %c0_49] : memref<3x16x32xf32, #tpu.memory_space<vmem>>, vector<1x16x32xf32>
    %83 = vector.shape_cast %82 : vector<1x16x32xf32> to vector<16x32xf32>
    %cst_50 = arith.constant dense<0.000000e+00> : vector<16x128xf32>
    %84 = tpu.matmul %83, %81, %cst_50 {dimension_numbers = #tpu.dot_dimension_numbers<[1], [0], [0], [1], [0, 0, 1, 1], [], []>} : vector<16x32xf32>, vector<32x128xf32>, vector<16x128xf32> -> vector<16x128xf32>
    %85 = vector.extract_strided_slice %67 {offsets = [64, 0], sizes = [16, 1], strides = [1, 1]} : vector<80x1xf32> to vector<16x1xf32>
    %86 = vector.broadcast %85 : vector<16x1xf32> to vector<16x128xf32>
    %87 = arith.addf %84, %86 : vector<16x128xf32>
    %88 = vector.extract_strided_slice %87 {offsets = [0, 0], sizes = [8, 128], strides = [1, 1]} : vector<16x128xf32> to vector<8x128xf32>
    %89 = vector.extract_strided_slice %87 {offsets = [8, 0], sizes = [8, 128], strides = [1, 1]} : vector<16x128xf32> to vector<8x128xf32>
    %90 = arith.subf %62, %88 : vector<8x128xf32>
    %cst_51 = arith.constant 0.000000e+00 : f32
    %91 = vector.broadcast %cst_51 : f32 to vector<8x128xf32>
    %92 = arith.subf %91, %89 : vector<8x128xf32>
    %93 = math.exp %92 : vector<8x128xf32>
    %94 = arith.mulf %90, %93 : vector<8x128xf32>
    %cst_52 = arith.constant dense<0.000000e+00> : vector<128xf32>
    %95 = vector.multi_reduction <add>, %89, %cst_52 [0] : vector<8x128xf32> to vector<128xf32>
    %96 = vector.shape_cast %95 : vector<128xf32> to vector<1x128xf32>
    %97 = arith.addf %65, %96 : vector<1x128xf32>
    %c0_53 = arith.constant 0 : index
    %c0_54 = arith.constant 0 : index
    %98 = vector.load %arg6[%c0_53, %c0_54] : memref<8x128xf32, #tpu.memory_space<vmem>>, vector<8x128xf32>
    tpu.vector_store %arg6[%c0_53, %c0_54], %94 {strides = array<i32>} : memref<8x128xf32, #tpu.memory_space<vmem>>, vector<8x128xf32>,
    %c0_55 = arith.constant 0 : index
    %c0_56 = arith.constant 0 : index
    %99 = vector.load %arg7[%c0_55, %c0_56] : memref<1x128xf32, #tpu.memory_space<vmem>>, vector<1x128xf32>
    tpu.vector_store %arg7[%c0_55, %c0_56], %97 {strides = array<i32>} : memref<1x128xf32, #tpu.memory_space<vmem>>, vector<1x128xf32>,
    return
  }
  func.func @transform_0(%arg0: i32) -> (i32, i32) {
    %c0_i32 = arith.constant 0 : i32
    %c0_i32_0 = arith.constant 0 : i32
    return %c0_i32, %arg0 : i32, i32
  }
  func.func @transform_1(%arg0: i32) -> (i32, i32, i32) {
    %c0_i32 = arith.constant 0 : i32
    %c0_i32_0 = arith.constant 0 : i32
    %c0_i32_1 = arith.constant 0 : i32
    %c0_i32_2 = arith.constant 0 : i32
    return %c0_i32, %c0_i32_0, %c0_i32_1 : i32, i32, i32
  }
  func.func @transform_2(%arg0: i32) -> (i32, i32, i32, i32) {
    %c0_i32 = arith.constant 0 : i32
    %c0_i32_0 = arith.constant 0 : i32
    %c0_i32_1 = arith.constant 0 : i32
    %c0_i32_2 = arith.constant 0 : i32
    %c0_i32_3 = arith.constant 0 : i32
    return %c0_i32, %c0_i32_0, %c0_i32_1, %c0_i32_2 : i32, i32, i32, i32
  }
  func.func @transform_3(%arg0: i32) -> (i32, i32, i32) {
    %c0_i32 = arith.constant 0 : i32
    %c0_i32_0 = arith.constant 0 : i32
    %c0_i32_1 = arith.constant 0 : i32
    %c0_i32_2 = arith.constant 0 : i32
    return %c0_i32, %c0_i32_0, %c0_i32_1 : i32, i32, i32
  }
  func.func @transform_4(%arg0: i32) -> (i32, i32, i32) {
    %c0_i32 = arith.constant 0 : i32
    %c0_i32_0 = arith.constant 0 : i32
    %c0_i32_1 = arith.constant 0 : i32
    %c0_i32_2 = arith.constant 0 : i32
    return %c0_i32, %c0_i32_0, %c0_i32_1 : i32, i32, i32
  }
  func.func @transform_5(%arg0: i32) -> (i32, i32) {
    %c0_i32 = arith.constant 0 : i32
    %c0_i32_0 = arith.constant 0 : i32
    return %c0_i32, %arg0 : i32, i32
  }
  func.func @transform_6(%arg0: i32) -> (i32, i32) {
    %c0_i32 = arith.constant 0 : i32
    %c0_i32_0 = arith.constant 0 : i32
    return %c0_i32, %arg0 : i32, i32
  }
}

</mosaic_0001>

<llo_original>
// kernel: tpu_custom_call.1
$region0: #{tpu_custom_call.1}
  #allocation0 [shape = 'u32[]', space=smem, size = 0x4, offset = 0x4, fixed_abs, tag = 'smem constant byte address 0x4 - core index']
  #allocation1 [shape = 'u32[144,128]{1,0:T(1,128)}', space=vmem, size = 0x12000, scoped, tag = 'internal scratch']
  %s0 = inlined_call_operand.vmem [shape: f32[8,256], index: 0, kind: input, shape index: {}]
  %s1 = inlined_call_operand.vmem [shape: f32[3,32,8], index: 1, kind: input, shape index: {}]
  %s2 = inlined_call_operand.vmem [shape: f32[3,1,32,32], index: 2, kind: input, shape index: {}]
  %s3 = inlined_call_operand.vmem [shape: f32[3,16,32], index: 3, kind: input, shape index: {}]
  %s4 = inlined_call_operand.vmem [shape: f32[3,80,1], index: 4, kind: input, shape index: {}]
  %s5 = inlined_call_operand.hbm [shape: f32[8,256], index: 5, kind: output, shape index: {0}]
  %s6 = inlined_call_operand.hbm [shape: f32[1,256], index: 6, kind: output, shape index: {1}]
  %7 = xla_tuple %s5, %s6
  %s8 = sld [smem:[#allocation0]]
  $region61: #{tpu_custom_call.1} parent=0
    _
  %s10 = ssub.s32 1, %s8
  %s11 = scalar_select 0, %s10, %s8
  $region1: #{tpu_custom_call.1} parent=0
    #allocation2 [shape = 'u8[8192]{0}', space=vmem, size = 0x2000, scoped, tag = 'output window, operand 0']
    #allocation3 [shape = 's32[2]{0}', space=sflag, size = 0x8, scoped, tag = 'scoped memory for tpu_custom_call.1']
    #allocation4 [shape = 'u8[1024]{0}', space=vmem, size = 0x400, scoped, tag = 'output window, operand 1']
    #allocation5 [shape = 's32[2]{0}', space=sflag, size = 0x8, scoped, tag = 'scoped memory for tpu_custom_call.1']
    %12 = vsyncpa [#allocation3], 0
    %s13 = scalar_lea.sflag [#allocation3], 1
    %14 = vsyncpa %s13, 0
    %15 = vsyncpa [#allocation5], 0
    %s16 = scalar_lea.sflag [#allocation5], 1
    %17 = vsyncpa %s16, 0
    loop: start=0, step=1, limit=4
    $region2: #{tpu_custom_call.1} parent=1 // loop_pre_header
      _
    $region3: #{tpu_custom_call.1} parent=1 // loop_header
      %s19 = sphi 0, %s23
      %p20 = scmp.ge.s32.totalorder %s19, 4
      %s29 = sphi 0, %s31
      %s32 = sphi 0, %s29
      %s33 = sphi 0, %s32
      %s49 = sphi 0, %s33
      %s53 = sphi 0, %s53
      %s55 = sphi 0, %s53
      %s56 = sphi 0, %s55
      %s70 = sphi 0, %s56
      %s74 = sphi 0, %s74
      %s76 = sphi 0, %s74
      %s77 = sphi 0, %s76
      %s91 = sphi 0, %s77
      %s95 = sphi 0, %s95
      %s97 = sphi 0, %s95
      %s98 = sphi 0, %s97
      %s112 = sphi 0, %s98
      %s116 = sphi 0, %s116
      %s118 = sphi 0, %s116
      %s119 = sphi 0, %s118
      %s133 = sphi 0, %s119
      %s139 = sphi 0, %s141
      %s142 = sphi 0, %s139
      %s143 = sphi 0, %s142
      %s159 = sphi 0, %s143
      %s165 = sphi 0, %s167
      %s168 = sphi 0, %s165
      %s169 = sphi 0, %s168
      %s185 = sphi 0, %s169
    $region4: #{tpu_custom_call.1} parent=1 // loop_header_branch
      %22 = sbr.rel (%p20) target = $region8
    $region5: #{tpu_custom_call.1} parent=1 // loop_body
      %s24 = ssub.s32 %s19, 1
      %s25 = ssub.s32 %s19, 2
      %s26 = sadd.s32 %s19, 1
      %s27 = ssub.s32 %s19, %s26
      %p28 = scmp.eq.s32.totalorder %s27, 0
      %s30 = sadd.s32 %s29, 1
      %s31 = scalar_select %p28, %s29, %s30
      %p34 = pneg %p28
      %p35 = scmp.eq.s32.totalorder %s19, 1
      %p36 = por %p34, %p35
      %p37 = scmp.ne.s32.totalorder %s29, %s32
      %p38 = scmp.eq.s32.totalorder %s19, 0
      %p39 = por %p37, %p38
      %p40 = scmp.ne.s32.totalorder %s29, %s32
      %p41 = scmp.eq.s32.totalorder %s24, 1
      %p42 = por %p40, %p41
      %p43 = scmp.ne.s32.totalorder %s32, %s33
      %p44 = scmp.eq.s32.totalorder %s24, 0
      %p45 = por %p43, %p44
      %p46 = scmp.ne.s32.totalorder %s32, %s33
      %p47 = scmp.eq.s32.totalorder %s25, 1
      %p48 = por %p46, %p47
      %p50 = scmp.ne.s32.totalorder %s33, %s49
      %p51 = scmp.eq.s32.totalorder %s25, 0
      %p52 = por %p50, %p51
      %s54 = sadd.s32 %s53, 1
      %p57 = scmp.eq.s32.totalorder %s19, 1
      %p58 = scmp.ne.s32.totalorder %s53, %s55
      %p59 = scmp.eq.s32.totalorder %s19, 0
      %p60 = por %p58, %p59
      %p61 = scmp.ne.s32.totalorder %s53, %s55
      %p62 = scmp.eq.s32.totalorder %s24, 1
      %p63 = por %p61, %p62
      %p64 = scmp.ne.s32.totalorder %s55, %s56
      %p65 = scmp.eq.s32.totalorder %s24, 0
      %p66 = por %p64, %p65
      %p67 = scmp.ne.s32.totalorder %s55, %s56
      %p68 = scmp.eq.s32.totalorder %s25, 1
      %p69 = por %p67, %p68
      %p71 = scmp.ne.s32.totalorder %s56, %s70
      %p72 = scmp.eq.s32.totalorder %s25, 0
      %p73 = por %p71, %p72
      %s75 = sadd.s32 %s74, 1
      %p78 = scmp.eq.s32.totalorder %s19, 1
      %p79 = scmp.ne.s32.totalorder %s74, %s76
      %p80 = scmp.eq.s32.totalorder %s19, 0
      %p81 = por %p79, %p80
      %p82 = scmp.ne.s32.totalorder %s74, %s76
      %p83 = scmp.eq.s32.totalorder %s24, 1
      %p84 = por %p82, %p83
      %p85 = scmp.ne.s32.totalorder %s76, %s77
      %p86 = scmp.eq.s32.totalorder %s24, 0
      %p87 = por %p85, %p86
      %p88 = scmp.ne.s32.totalorder %s76, %s77
      %p89 = scmp.eq.s32.totalorder %s25, 1
      %p90 = por %p88, %p89
      %p92 = scmp.ne.s32.totalorder %s77, %s91
      %p93 = scmp.eq.s32.totalorder %s25, 0
      %p94 = por %p92, %p93
      %s96 = sadd.s32 %s95, 1
      %p99 = scmp.eq.s32.totalorder %s19, 1
      %p100 = scmp.ne.s32.totalorder %s95, %s97
      %p101 = scmp.eq.s32.totalorder %s19, 0
      %p102 = por %p100, %p101
      %p103 = scmp.ne.s32.totalorder %s95, %s97
      %p104 = scmp.eq.s32.totalorder %s24, 1
      %p105 = por %p103, %p104
      %p106 = scmp.ne.s32.totalorder %s97, %s98
      %p107 = scmp.eq.s32.totalorder %s24, 0
      %p108 = por %p106, %p107
      %p109 = scmp.ne.s32.totalorder %s97, %s98
      %p110 = scmp.eq.s32.totalorder %s25, 1
      %p111 = por %p109, %p110
      %p113 = scmp.ne.s32.totalorder %s98, %s112
      %p114 = scmp.eq.s32.totalorder %s25, 0
      %p115 = por %p113, %p114
      %s117 = sadd.s32 %s116, 1
      %p120 = scmp.eq.s32.totalorder %s19, 1
      %p121 = scmp.ne.s32.totalorder %s116, %s118
      %p122 = scmp.eq.s32.totalorder %s19, 0
      %p123 = por %p121, %p122
      %p124 = scmp.ne.s32.totalorder %s116, %s118
      %p125 = scmp.eq.s32.totalorder %s24, 1
      %p126 = por %p124, %p125
      %p127 = scmp.ne.s32.totalorder %s118, %s119
      %p128 = scmp.eq.s32.totalorder %s24, 0
      %p129 = por %p127, %p128
      %p130 = scmp.ne.s32.totalorder %s118, %s119
      %p131 = scmp.eq.s32.totalorder %s25, 1
      %p132 = por %p130, %p131
      %p134 = scmp.ne.s32.totalorder %s119, %s133
      %p135 = scmp.eq.s32.totalorder %s25, 0
      %p136 = por %p134, %p135
      %s137 = ssub.s32 %s19, %s26
      %p138 = scmp.eq.s32.totalorder %s137, 0
      %s140 = sadd.s32 %s139, 1
      %s141 = scalar_select %p138, %s139, %s140
      %p144 = pneg %p138
      %p145 = scmp.eq.s32.totalorder %s19, 1
      %p146 = por %p144, %p145
      %p147 = scmp.ne.s32.totalorder %s139, %s142
      %p148 = scmp.eq.s32.totalorder %s19, 0
      %p149 = por %p147, %p148
      %p150 = scmp.ne.s32.totalorder %s139, %s142
      %p151 = scmp.eq.s32.totalorder %s24, 1
      %p152 = por %p150, %p151
      %p153 = scmp.ne.s32.totalorder %s142, %s143
      %p154 = scmp.eq.s32.totalorder %s24, 0
      %p155 = por %p153, %p154
      %p156 = scmp.ne.s32.totalorder %s142, %s143
      %p157 = scmp.eq.s32.totalorder %s25, 1
      %p158 = por %p156, %p157
      %p160 = scmp.ne.s32.totalorder %s143, %s159
      %p161 = scmp.eq.s32.totalorder %s25, 0
      %p162 = por %p160, %p161
      %s163 = ssub.s32 %s19, %s26
      %p164 = scmp.eq.s32.totalorder %s163, 0
      %s166 = sadd.s32 %s165, 1
      %s167 = scalar_select %p164, %s165, %s166
      %p170 = pneg %p164
      %p171 = scmp.eq.s32.totalorder %s19, 1
      %p172 = por %p170, %p171
      %p173 = scmp.ne.s32.totalorder %s165, %s168
      %p174 = scmp.eq.s32.totalorder %s19, 0
      %p175 = por %p173, %p174
      %p176 = scmp.ne.s32.totalorder %s165, %s168
      %p177 = scmp.eq.s32.totalorder %s24, 1
      %p178 = por %p176, %p177
      %p179 = scmp.ne.s32.totalorder %s168, %s169
      %p180 = scmp.eq.s32.totalorder %s24, 0
      %p181 = por %p179, %p180
      %p182 = scmp.ne.s32.totalorder %s168, %s169
      %p183 = scmp.eq.s32.totalorder %s25, 1
      %p184 = por %p182, %p183
      %p186 = scmp.ne.s32.totalorder %s169, %s185
      %p187 = scmp.eq.s32.totalorder %s25, 0
      %p188 = por %p186, %p187
      %p189 = scmp.le.s32.totalorder 1, %s19
      %p190 = scmp.lt.s32.totalorder %s19, 3
      %p191 = pnand %p189, %p190
      %p192 = pneg %p191
      // Predicated region
      $region9: #{tpu_custom_call.1} parent=5 // pred_check
        _
      $region10: #{tpu_custom_call.1} parent=5 // pred_check_branch
        %194 = sbr.rel (%p191) target = $region12
      $region11: #{tpu_custom_call.1} parent=5 // pred_region
        %s195 = ssub.s32 %s19, 1
        // Predicated region
        $region13: #{tpu_custom_call.1} parent=11 // pred_check
          %p196 = pneg %p66
        $region14: #{tpu_custom_call.1} parent=11 // pred_check_branch
          %198 = sbr.rel (%p196) target = $region16
        $region15: #{tpu_custom_call.1} parent=11 // pred_region
          _
        $region16: #{tpu_custom_call.1} parent=11 // pred_fallthru
          _
        // Predicated region
        $region17: #{tpu_custom_call.1} parent=11 // pred_check
          %p199 = pneg %p87
        $region18: #{tpu_custom_call.1} parent=11 // pred_check_branch
          %201 = sbr.rel (%p199) target = $region20
        $region19: #{tpu_custom_call.1} parent=11 // pred_region
          _
        $region20: #{tpu_custom_call.1} parent=11 // pred_fallthru
          _
        // Predicated region
        $region21: #{tpu_custom_call.1} parent=11 // pred_check
          %p202 = pneg %p108
        $region22: #{tpu_custom_call.1} parent=11 // pred_check_branch
          %204 = sbr.rel (%p202) target = $region24
        $region23: #{tpu_custom_call.1} parent=11 // pred_region
          _
        $region24: #{tpu_custom_call.1} parent=11 // pred_fallthru
          _
        // Predicated region
        $region25: #{tpu_custom_call.1} parent=11 // pred_check
          %p205 = pneg %p129
        $region26: #{tpu_custom_call.1} parent=11 // pred_check_branch
          %207 = sbr.rel (%p205) target = $region28
        $region27: #{tpu_custom_call.1} parent=11 // pred_region
          _
        $region28: #{tpu_custom_call.1} parent=11 // pred_fallthru
          _
      $region12: #{tpu_custom_call.1} parent=5 // pred_fallthru
        _
      %p208 = scmp.lt.s32.totalorder %s19, 2
      // Predicated region
      $region29: #{tpu_custom_call.1} parent=5 // pred_check
        %p209 = pneg %p208
      $region30: #{tpu_custom_call.1} parent=5 // pred_check_branch
        %211 = sbr.rel (%p209) target = $region32
      $region31: #{tpu_custom_call.1} parent=5 // pred_region
        // Predicated region
        $region33: #{tpu_custom_call.1} parent=31 // pred_check
          %p212 = pneg %p39
        $region34: #{tpu_custom_call.1} parent=31 // pred_check_branch
          %214 = sbr.rel (%p212) target = $region36
        $region35: #{tpu_custom_call.1} parent=31 // pred_region
          %p215 = scmp.lt.s32.totalorder %s19, 1
          %s216 = scalar_select %p215, %s19, 1
          %s217 = smul.addr %s216, 8
          %s218 = scalar_lea.vmem %s0, %s217
        $region36: #{tpu_custom_call.1} parent=31 // pred_fallthru
          _
      $region32: #{tpu_custom_call.1} parent=5 // pred_fallthru
        _
      %p219 = scmp.le.s32.totalorder 1, %s19
      %p220 = scmp.lt.s32.totalorder %s19, 3
      %p221 = pnand %p219, %p220
      %p222 = pneg %p221
      // Predicated region
      $region37: #{tpu_custom_call.1} parent=5 // pred_check
        _
      $region38: #{tpu_custom_call.1} parent=5 // pred_check_branch
        %224 = sbr.rel (%p221) target = $region40
      $region39: #{tpu_custom_call.1} parent=5 // pred_region
        %s225 = ssub.s32 %s19, 1
        %p226 = scmp.lt.s32.totalorder %s24, 1
        %s227 = scalar_select %p226, %s24, 1
        %s228 = smul.addr %s227, 8
        %s229 = scalar_lea.vmem %s0, %s228
        %p230 = pneg %p45
        %p231 = pneg %p42
        %p232 = pneg %p66
        %p233 = pneg %p63
        %p234 = pneg %p87
        %p235 = pneg %p84
        %p236 = pneg %p108
        %p237 = pneg %p105
        %p238 = pneg %p129
        %p239 = pneg %p126
        %p240 = pneg %p155
        %p241 = pneg %p152
        %s242 = sand.u32 %s142, 1
        %s243 = scalar_lea.sflag [#allocation3], %s242
        %s244 = sand.u32 %s142, 1
        %s245 = smul.addr %s244, 8
        %s246 = scalar_lea.vmem [#allocation2], %s245
        %p247 = pneg %p181
        %p248 = pneg %p178
        %s249 = sand.u32 %s168, 1
        %s250 = scalar_lea.sflag [#allocation5], %s249
        %s251 = sand.u32 %s168, 1
        %s252 = scalar_lea.vmem [#allocation4], %s251
        %p253 = scmp.lt.s32.totalorder %s24, 1
        %s254 = scalar_select %p253, %s24, 1
        %s255 = smul.addr %s254, 8
        %s256 = scalar_lea.vmem %s0, %s255
        %v257 = vld [vmem:[%s256] sm:$0xff]
        %v258 = vld [vmem:[%s4] sm:$0xff]
        %v259 = vld [vmem:[%s4 + $0x8] sm:$0xff]
        %v260 = vld [vmem:[%s4 + $0x10] sm:$0xff]
        %v261 = vld [vmem:[%s4 + $0x18] sm:$0xff]
        %v262 = vld [vmem:[%s4 + $0x20] sm:$0xff]
        %v263 = vld [vmem:[%s4 + $0x28] sm:$0xff]
        %v264 = vld [vmem:[%s4 + $0x30] sm:$0xff]
        %v265 = vld [vmem:[%s4 + $0x38] sm:$0xff]
        %v266 = vld [vmem:[%s4 + $0x40] sm:$0xff]
        %v267 = vld [vmem:[%s4 + $0x48] sm:$0xff]
        %v268 = vld [vmem:[%s1] sm:$0xff]
        %v269 = vld [vmem:[%s1 + $0x8] sm:$0xff]
        %v270 = vld [vmem:[%s1 + $0x10] sm:$0xff]
        %v271 = vld [vmem:[%s1 + $0x18] sm:$0xff]
        %273 = vset.pattern.permute.xlu0 0
        %274 = vperm.xlu0 %273, %v258
        %v275 = vpop.permute.xlu0 %274
        %278 = vset.pattern.permute.xlu0 0
        %279 = vperm.xlu0 %278, %v259
        %v280 = vpop.permute.xlu0 %279
        %283 = vset.pattern.permute.xlu0 0
        %284 = vperm.xlu0 %283, %v260
        %v285 = vpop.permute.xlu0 %284
        %288 = vset.pattern.permute.xlu0 0
        %289 = vperm.xlu0 %288, %v261
        %v290 = vpop.permute.xlu0 %289
        %vm292 = vcmask 64512
        %v294 = vsel %vm292, %v268, 0
        %v297 = vsel %vm292, %v269, 0
        %v300 = vsel %vm292, %v270, 0
        %v303 = vsel %vm292, %v271, 0
        %305 = vmatprep.subr.mxu0 0.0
        %306 = vmatpush1.msra.mxu0 %v257
        %307 = vmatprep.subr.mxu0 0.0
        %308 = vmatpush1.msra.mxu0 0.0
        %309 = vmatprep.subr.mxu0 0.0
        %310 = vmatpush1.msra.mxu0 0.0
        %311 = vmatprep.subr.mxu0 0.0
        %312 = vmatpush1.msra.mxu0 0.0
        %313 = vmatprep.subr.mxu0 0.0
        %314 = vmatpush1.msra.mxu0 0.0
        %315 = vmatprep.subr.mxu0 0.0
        %316 = vmatpush1.msra.mxu0 0.0
        %317 = vmatprep.subr.mxu0 0.0
        %318 = vmatpush1.msra.mxu0 0.0
        %319 = vmatprep.subr.mxu0 0.0
        %320 = vmatpush1.msra.mxu0 0.0
        %321 = vmatprep.subr.mxu0 0.0
        %322 = vmatpush1.msra.mxu0 0.0
        %323 = vmatprep.subr.mxu0 0.0
        %324 = vmatpush1.msra.mxu0 0.0
        %325 = vmatprep.subr.mxu0 0.0
        %326 = vmatpush1.msra.mxu0 0.0
        %327 = vmatprep.subr.mxu0 0.0
        %328 = vmatpush1.msra.mxu0 0.0
        %329 = vmatprep.subr.mxu0 0.0
        %330 = vmatpush1.msra.mxu0 0.0
        %331 = vmatprep.subr.mxu0 0.0
        %332 = vmatpush1.msra.mxu0 0.0
        %333 = vmatprep.subr.mxu0 0.0
        %334 = vmatpush1.msra.mxu0 0.0
        %335 = vmatprep.subr.mxu0 0.0
        %336 = vmatpush1.msra.mxu0 0.0
        %337 = vmatprep.subr.mxu0 0.0
        %338 = vmatpush1.msra.mxu0 0.0
        %339 = vmatprep.subr.mxu0 0.0
        %340 = vmatpush1.msra.mxu0 0.0
        %341 = vmatprep.subr.mxu0 0.0
        %342 = vmatpush1.msra.mxu0 0.0
        %343 = vmatprep.subr.mxu0 0.0
        %344 = vmatpush1.msra.mxu0 0.0
        %345 = vmatprep.subr.mxu0 0.0
        %346 = vmatpush1.msra.mxu0 0.0
        %347 = vmatprep.subr.mxu0 0.0
        %348 = vmatpush1.msra.mxu0 0.0
        %349 = vmatprep.subr.mxu0 0.0
        %350 = vmatpush1.msra.mxu0 0.0
        %351 = vmatprep.subr.mxu0 0.0
        %352 = vmatpush1.msra.mxu0 0.0
        %353 = vmatprep.subr.mxu0 0.0
        %354 = vmatpush1.msra.mxu0 0.0
        %355 = vmatprep.subr.mxu0 0.0
        %356 = vmatpush1.msra.mxu0 0.0
        %357 = vmatprep.subr.mxu0 0.0
        %358 = vmatpush1.msra.mxu0 0.0
        %359 = vmatprep.subr.mxu0 0.0
        %360 = vmatpush1.msra.mxu0 0.0
        %361 = vmatprep.subr.mxu0 0.0
        %362 = vmatpush1.msra.mxu0 0.0
        %363 = vmatprep.subr.mxu0 0.0
        %364 = vmatpush1.msra.mxu0 0.0
        %365 = vmatprep.subr.mxu0 0.0
        %366 = vmatpush1.msra.mxu0 0.0
        %367 = vmatprep.subr.mxu0 0.0
        %368 = vmatpush1.msra.mxu0 0.0
        %369 = vmatprep.mubr.f32.mxu0 0.0
        %370 = vmatmul.mubr.f32.gmra.mrb[0].mxu0 %v294
        %v371 = vpop.f32.mrb[0].mxu0
        %v372 = vadd.f32 %v275, %v371
        %v373 = vpop.f32.mrb[0].mxu0
        %374 = vmatprep.mubr.f32.mxu0 0.0
        %375 = vmatmul.mubr.f32.gmra.mrb[0].mxu0 %v297
        %v376 = vpop.f32.mrb[0].mxu0
        %v377 = vadd.f32 %v280, %v376
        %v378 = vpop.f32.mrb[0].mxu0
        %379 = vmatprep.mubr.f32.mxu0 0.0
        %380 = vmatmul.mubr.f32.gmra.mrb[0].mxu0 %v300
        %v381 = vpop.f32.mrb[0].mxu0
        %v382 = vadd.f32 %v285, %v381
        %v383 = vpop.f32.mrb[0].mxu0
        %384 = vmatprep.mubr.f32.mxu0 0.0
        %385 = vmatmul.mubr.f32.gmra.mrb[0].mxu0 %v303
        %v386 = vpop.f32.mrb[0].mxu0
        %v387 = vadd.f32 %v290, %v386
        %v388 = vpop.f32.mrb[0].mxu0
        %389 = vdwg.mxu0
        %v390 = vtanh.pop %v372
        %v391 = vtanh.pop %v377
        %v392 = vtanh.pop %v382
        %v393 = vtanh.pop %v387
        %v394 = vld [vmem:[%s2] sm:$0xff]
        %v395 = vld [vmem:[%s2 + $0x8] sm:$0xff]
        %v396 = vld [vmem:[%s2 + $0x10] sm:$0xff]
        %v397 = vld [vmem:[%s2 + $0x18] sm:$0xff]
        %399 = vset.pattern.permute.xlu0 0
        %400 = vperm.xlu0 %399, %v262
        %v401 = vpop.permute.xlu0 %400
        %404 = vset.pattern.permute.xlu0 0
        %405 = vperm.xlu0 %404, %v263
        %v406 = vpop.permute.xlu0 %405
        %409 = vset.pattern.permute.xlu0 0
        %410 = vperm.xlu0 %409, %v264
        %v411 = vpop.permute.xlu0 %410
        %414 = vset.pattern.permute.xlu0 0
        %415 = vperm.xlu0 %414, %v265
        %v416 = vpop.permute.xlu0 %415
        %vm418 = vcmask 261120
        %v420 = vsel %vm418, %v394, 0
        %v423 = vsel %vm418, %v395, 0
        %v426 = vsel %vm418, %v396, 0
        %v429 = vsel %vm418, %v397, 0
        %431 = vmatprep.subr.mxu0 0.0
        %432 = vmatpush1.msra.mxu0 %v390
        %433 = vmatprep.subr.mxu0 0.0
        %434 = vmatpush1.msra.mxu0 %v391
        %435 = vmatprep.subr.mxu0 0.0
        %436 = vmatpush1.msra.mxu0 %v392
        %437 = vmatprep.subr.mxu0 0.0
        %438 = vmatpush1.msra.mxu0 %v393
        %439 = vmatprep.subr.mxu0 0.0
        %440 = vmatpush1.msra.mxu0 0.0
        %441 = vmatprep.subr.mxu0 0.0
        %442 = vmatpush1.msra.mxu0 0.0
        %443 = vmatprep.subr.mxu0 0.0
        %444 = vmatpush1.msra.mxu0 0.0
        %445 = vmatprep.subr.mxu0 0.0
        %446 = vmatpush1.msra.mxu0 0.0
        %447 = vmatprep.subr.mxu0 0.0
        %448 = vmatpush1.msra.mxu0 0.0
        %449 = vmatprep.subr.mxu0 0.0
        %450 = vmatpush1.msra.mxu0 0.0
        %451 = vmatprep.subr.mxu0 0.0
        %452 = vmatpush1.msra.mxu0 0.0
        %453 = vmatprep.subr.mxu0 0.0
        %454 = vmatpush1.msra.mxu0 0.0
        %455 = vmatprep.subr.mxu0 0.0
        %456 = vmatpush1.msra.mxu0 0.0
        %457 = vmatprep.subr.mxu0 0.0
        %458 = vmatpush1.msra.mxu0 0.0
        %459 = vmatprep.subr.mxu0 0.0
        %460 = vmatpush1.msra.mxu0 0.0
        %461 = vmatprep.subr.mxu0 0.0
        %462 = vmatpush1.msra.mxu0 0.0
        %463 = vmatprep.subr.mxu0 0.0
        %464 = vmatpush1.msra.mxu0 0.0
        %465 = vmatprep.subr.mxu0 0.0
        %466 = vmatpush1.msra.mxu0 0.0
        %467 = vmatprep.subr.mxu0 0.0
        %468 = vmatpush1.msra.mxu0 0.0
        %469 = vmatprep.subr.mxu0 0.0
        %470 = vmatpush1.msra.mxu0 0.0
        %471 = vmatprep.subr.mxu0 0.0
        %472 = vmatpush1.msra.mxu0 0.0
        %473 = vmatprep.subr.mxu0 0.0
        %474 = vmatpush1.msra.mxu0 0.0
        %475 = vmatprep.subr.mxu0 0.0
        %476 = vmatpush1.msra.mxu0 0.0
        %477 = vmatprep.subr.mxu0 0.0
        %478 = vmatpush1.msra.mxu0 0.0
        %479 = vmatprep.subr.mxu0 0.0
        %480 = vmatpush1.msra.mxu0 0.0
        %481 = vmatprep.subr.mxu0 0.0
        %482 = vmatpush1.msra.mxu0 0.0
        %483 = vmatprep.subr.mxu0 0.0
        %484 = vmatpush1.msra.mxu0 0.0
        %485 = vmatprep.subr.mxu0 0.0
        %486 = vmatpush1.msra.mxu0 0.0
        %487 = vmatprep.subr.mxu0 0.0
        %488 = vmatpush1.msra.mxu0 0.0
        %489 = vmatprep.subr.mxu0 0.0
        %490 = vmatpush1.msra.mxu0 0.0
        %491 = vmatprep.subr.mxu0 0.0
        %492 = vmatpush1.msra.mxu0 0.0
        %493 = vmatprep.subr.mxu0 0.0
        %494 = vmatpush1.msra.mxu0 0.0
        %495 = vmatprep.mubr.f32.mxu0 0.0
        %496 = vmatmul.mubr.f32.gmra.mrb[0].mxu0 %v420
        %v497 = vpop.f32.mrb[0].mxu0
        %v498 = vadd.f32 %v401, %v497
        %v499 = vpop.f32.mrb[0].mxu0
        %500 = vmatprep.mubr.f32.mxu0 0.0
        %501 = vmatmul.mubr.f32.gmra.mrb[0].mxu0 %v423
        %v502 = vpop.f32.mrb[0].mxu0
        %v503 = vadd.f32 %v406, %v502
        %v504 = vpop.f32.mrb[0].mxu0
        %505 = vmatprep.mubr.f32.mxu0 0.0
        %506 = vmatmul.mubr.f32.gmra.mrb[0].mxu0 %v426
        %v507 = vpop.f32.mrb[0].mxu0
        %v508 = vadd.f32 %v411, %v507
        %v509 = vpop.f32.mrb[0].mxu0
        %510 = vmatprep.mubr.f32.mxu0 0.0
        %511 = vmatmul.mubr.f32.gmra.mrb[0].mxu0 %v429
        %v512 = vpop.f32.mrb[0].mxu0
        %v513 = vadd.f32 %v416, %v512
        %v514 = vpop.f32.mrb[0].mxu0
        %515 = vdwg.mxu0
        %v516 = vtanh.pop %v498
        %v517 = vtanh.pop %v503
        %v518 = vtanh.pop %v508
        %v519 = vtanh.pop %v513
        %v520 = vld [vmem:[%s3] sm:$0xff]
        %v521 = vld [vmem:[%s3 + $0x8] sm:$0xff]
        %523 = vset.pattern.permute.xlu0 0
        %524 = vperm.xlu0 %523, %v266
        %v525 = vpop.permute.xlu0 %524
        %528 = vset.pattern.permute.xlu0 0
        %529 = vperm.xlu0 %528, %v267
        %v530 = vpop.permute.xlu0 %529
        %v533 = vsel %vm418, %v520, 0
        %v536 = vsel %vm418, %v521, 0
        %538 = vmatprep.subr.mxu0 0.0
        %539 = vmatpush1.msra.mxu0 %v516
        %540 = vmatprep.subr.mxu0 0.0
        %541 = vmatpush1.msra.mxu0 %v517
        %542 = vmatprep.subr.mxu0 0.0
        %543 = vmatpush1.msra.mxu0 %v518
        %544 = vmatprep.subr.mxu0 0.0
        %545 = vmatpush1.msra.mxu0 %v519
        %546 = vmatprep.subr.mxu0 0.0
        %547 = vmatpush1.msra.mxu0 0.0
        %548 = vmatprep.subr.mxu0 0.0
        %549 = vmatpush1.msra.mxu0 0.0
        %550 = vmatprep.subr.mxu0 0.0
        %551 = vmatpush1.msra.mxu0 0.0
        %552 = vmatprep.subr.mxu0 0.0
        %553 = vmatpush1.msra.mxu0 0.0
        %554 = vmatprep.subr.mxu0 0.0
        %555 = vmatpush1.msra.mxu0 0.0
        %556 = vmatprep.subr.mxu0 0.0
        %557 = vmatpush1.msra.mxu0 0.0
        %558 = vmatprep.subr.mxu0 0.0
        %559 = vmatpush1.msra.mxu0 0.0
        %560 = vmatprep.subr.mxu0 0.0
        %561 = vmatpush1.msra.mxu0 0.0
        %562 = vmatprep.subr.mxu0 0.0
        %563 = vmatpush1.msra.mxu0 0.0
        %564 = vmatprep.subr.mxu0 0.0
        %565 = vmatpush1.msra.mxu0 0.0
        %566 = vmatprep.subr.mxu0 0.0
        %567 = vmatpush1.msra.mxu0 0.0
        %568 = vmatprep.subr.mxu0 0.0
        %569 = vmatpush1.msra.mxu0 0.0
        %570 = vmatprep.subr.mxu0 0.0
        %571 = vmatpush1.msra.mxu0 0.0
        %572 = vmatprep.subr.mxu0 0.0
        %573 = vmatpush1.msra.mxu0 0.0
        %574 = vmatprep.subr.mxu0 0.0
        %575 = vmatpush1.msra.mxu0 0.0
        %576 = vmatprep.subr.mxu0 0.0
        %577 = vmatpush1.msra.mxu0 0.0
        %578 = vmatprep.subr.mxu0 0.0
        %579 = vmatpush1.msra.mxu0 0.0
        %580 = vmatprep.subr.mxu0 0.0
        %581 = vmatpush1.msra.mxu0 0.0
        %582 = vmatprep.subr.mxu0 0.0
        %583 = vmatpush1.msra.mxu0 0.0
        %584 = vmatprep.subr.mxu0 0.0
        %585 = vmatpush1.msra.mxu0 0.0
        %586 = vmatprep.subr.mxu0 0.0
        %587 = vmatpush1.msra.mxu0 0.0
        %588 = vmatprep.subr.mxu0 0.0
        %589 = vmatpush1.msra.mxu0 0.0
        %590 = vmatprep.subr.mxu0 0.0
        %591 = vmatpush1.msra.mxu0 0.0
        %592 = vmatprep.subr.mxu0 0.0
        %593 = vmatpush1.msra.mxu0 0.0
        %594 = vmatprep.subr.mxu0 0.0
        %595 = vmatpush1.msra.mxu0 0.0
        %596 = vmatprep.subr.mxu0 0.0
        %597 = vmatpush1.msra.mxu0 0.0
        %598 = vmatprep.subr.mxu0 0.0
        %599 = vmatpush1.msra.mxu0 0.0
        %600 = vmatprep.subr.mxu0 0.0
        %601 = vmatpush1.msra.mxu0 0.0
        %602 = vmatprep.mubr.f32.mxu0 0.0
        %603 = vmatmul.mubr.f32.gmra.mrb[0].mxu0 %v533
        %v604 = vpop.f32.mrb[0].mxu0
        %v605 = vadd.f32 %v525, %v604
        %v606 = vpop.f32.mrb[0].mxu0
        %607 = vmatprep.mubr.f32.mxu0 0.0
        %608 = vmatmul.mubr.f32.gmra.mrb[0].mxu0 %v536
        %v609 = vpop.f32.mrb[0].mxu0
        %v610 = vadd.f32 %v530, %v609
        %v611 = vpop.f32.mrb[0].mxu0
        %612 = vdwg.mxu0
        %v613 = vsub.f32 %v257, %v605
        %v614 = vsub.f32 0.0, %v610
        %v615 = vmul.f32 %v614, 1.442695
        %v616 = vpow.pop %v615
        %v617 = vmul.f32 %v613, %v616
        %v618 = vrot.slane %v610, 4
        %v619 = vadd.f32 %v610, %v618
        %v620 = vrot.slane %v619, 2
        %v621 = vadd.f32 %v619, %v620
        %v622 = vrot.slane %v621, 1
        %v623 = vadd.f32 %v621, %v622
        %v624 = vadd.f32 %v623, 0.0
        %s625 = scalar_lea.vmem %s4, 80
        %v626 = vld [vmem:[%s625] sm:$0xff]
        %v627 = vld [vmem:[%s625 + $0x8] sm:$0xff]
        %v628 = vld [vmem:[%s625 + $0x10] sm:$0xff]
        %v629 = vld [vmem:[%s625 + $0x18] sm:$0xff]
        %v630 = vld [vmem:[%s625 + $0x20] sm:$0xff]
        %v631 = vld [vmem:[%s625 + $0x28] sm:$0xff]
        %v632 = vld [vmem:[%s625 + $0x30] sm:$0xff]
        %v633 = vld [vmem:[%s625 + $0x38] sm:$0xff]
        %v634 = vld [vmem:[%s625 + $0x40] sm:$0xff]
        %v635 = vld [vmem:[%s625 + $0x48] sm:$0xff]
        %s636 = scalar_lea.vmem %s1, 32
        %v637 = vld [vmem:[%s636] sm:$0xff]
        %v638 = vld [vmem:[%s636 + $0x8] sm:$0xff]
        %v639 = vld [vmem:[%s636 + $0x10] sm:$0xff]
        %v640 = vld [vmem:[%s636 + $0x18] sm:$0xff]
        %642 = vset.pattern.permute.xlu0 0
        %643 = vperm.xlu0 %642, %v626
        %v644 = vpop.permute.xlu0 %643
        %647 = vset.pattern.permute.xlu0 0
        %648 = vperm.xlu0 %647, %v627
        %v649 = vpop.permute.xlu0 %648
        %652 = vset.pattern.permute.xlu0 0
        %653 = vperm.xlu0 %652, %v628
        %v654 = vpop.permute.xlu0 %653
        %657 = vset.pattern.permute.xlu0 0
        %658 = vperm.xlu0 %657, %v629
        %v659 = vpop.permute.xlu0 %658
        %v662 = vsel %vm292, %v637, 0
        %v665 = vsel %vm292, %v638, 0
        %v668 = vsel %vm292, %v639, 0
        %v671 = vsel %vm292, %v640, 0
        %673 = vmatprep.subr.mxu0 0.0
        %674 = vmatpush1.msra.mxu0 %v617
        %675 = vmatprep.subr.mxu0 0.0
        %676 = vmatpush1.msra.mxu0 0.0
        %677 = vmatprep.subr.mxu0 0.0
        %678 = vmatpush1.msra.mxu0 0.0
        %679 = vmatprep.subr.mxu0 0.0
        %680 = vmatpush1.msra.mxu0 0.0
        %681 = vmatprep.subr.mxu0 0.0
        %682 = vmatpush1.msra.mxu0 0.0
        %683 = vmatprep.subr.mxu0 0.0
        %684 = vmatpush1.msra.mxu0 0.0
        %685 = vmatprep.subr.mxu0 0.0
        %686 = vmatpush1.msra.mxu0 0.0
        %687 = vmatprep.subr.mxu0 0.0
        %688 = vmatpush1.msra.mxu0 0.0
        %689 = vmatprep.subr.mxu0 0.0
        %690 = vmatpush1.msra.mxu0 0.0
        %691 = vmatprep.subr.mxu0 0.0
        %692 = vmatpush1.msra.mxu0 0.0
        %693 = vmatprep.subr.mxu0 0.0
        %694 = vmatpush1.msra.mxu0 0.0
        %695 = vmatprep.subr.mxu0 0.0
        %696 = vmatpush1.msra.mxu0 0.0
        %697 = vmatprep.subr.mxu0 0.0
        %698 = vmatpush1.msra.mxu0 0.0
        %699 = vmatprep.subr.mxu0 0.0
        %700 = vmatpush1.msra.mxu0 0.0
        %701 = vmatprep.subr.mxu0 0.0
        %702 = vmatpush1.msra.mxu0 0.0
        %703 = vmatprep.subr.mxu0 0.0
        %704 = vmatpush1.msra.mxu0 0.0
        %705 = vmatprep.subr.mxu0 0.0
        %706 = vmatpush1.msra.mxu0 0.0
        %707 = vmatprep.subr.mxu0 0.0
        %708 = vmatpush1.msra.mxu0 0.0
        %709 = vmatprep.subr.mxu0 0.0
        %710 = vmatpush1.msra.mxu0 0.0
        %711 = vmatprep.subr.mxu0 0.0
        %712 = vmatpush1.msra.mxu0 0.0
        %713 = vmatprep.subr.mxu0 0.0
        %714 = vmatpush1.msra.mxu0 0.0
        %715 = vmatprep.subr.mxu0 0.0
        %716 = vmatpush1.msra.mxu0 0.0
        %717 = vmatprep.subr.mxu0 0.0
        %718 = vmatpush1.msra.mxu0 0.0
        %719 = vmatprep.subr.mxu0 0.0
        %720 = vmatpush1.msra.mxu0 0.0
        %721 = vmatprep.subr.mxu0 0.0
        %722 = vmatpush1.msra.mxu0 0.0
        %723 = vmatprep.subr.mxu0 0.0
        %724 = vmatpush1.msra.mxu0 0.0
        %725 = vmatprep.subr.mxu0 0.0
        %726 = vmatpush1.msra.mxu0 0.0
        %727 = vmatprep.subr.mxu0 0.0
        %728 = vmatpush1.msra.mxu0 0.0
        %729 = vmatprep.subr.mxu0 0.0
        %730 = vmatpush1.msra.mxu0 0.0
        %731 = vmatprep.subr.mxu0 0.0
        %732 = vmatpush1.msra.mxu0 0.0
        %733 = vmatprep.subr.mxu0 0.0
        %734 = vmatpush1.msra.mxu0 0.0
        %735 = vmatprep.subr.mxu0 0.0
        %736 = vmatpush1.msra.mxu0 0.0
        %737 = vmatprep.mubr.f32.mxu0 0.0
        %738 = vmatmul.mubr.f32.gmra.mrb[0].mxu0 %v662
        %v739 = vpop.f32.mrb[0].mxu0
        %v740 = vadd.f32 %v644, %v739
        %v741 = vpop.f32.mrb[0].mxu0
        %742 = vmatprep.mubr.f32.mxu0 0.0
        %743 = vmatmul.mubr.f32.gmra.mrb[0].mxu0 %v665
        %v744 = vpop.f32.mrb[0].mxu0
        %v745 = vadd.f32 %v649, %v744
        %v746 = vpop.f32.mrb[0].mxu0
        %747 = vmatprep.mubr.f32.mxu0 0.0
        %748 = vmatmul.mubr.f32.gmra.mrb[0].mxu0 %v668
        %v749 = vpop.f32.mrb[0].mxu0
        %v750 = vadd.f32 %v654, %v749
        %v751 = vpop.f32.mrb[0].mxu0
        %752 = vmatprep.mubr.f32.mxu0 0.0
        %753 = vmatmul.mubr.f32.gmra.mrb[0].mxu0 %v671
        %v754 = vpop.f32.mrb[0].mxu0
        %v755 = vadd.f32 %v659, %v754
        %v756 = vpop.f32.mrb[0].mxu0
        %757 = vdwg.mxu0
        %v758 = vtanh.pop %v740
        %v759 = vtanh.pop %v745
        %v760 = vtanh.pop %v750
        %v761 = vtanh.pop %v755
        %s762 = scalar_lea.vmem %s2, 32
        %v763 = vld [vmem:[%s762] sm:$0xff]
        %v764 = vld [vmem:[%s762 + $0x8] sm:$0xff]
        %v765 = vld [vmem:[%s762 + $0x10] sm:$0xff]
        %v766 = vld [vmem:[%s762 + $0x18] sm:$0xff]
        %768 = vset.pattern.permute.xlu0 0
        %769 = vperm.xlu0 %768, %v630
        %v770 = vpop.permute.xlu0 %769
        %773 = vset.pattern.permute.xlu0 0
        %774 = vperm.xlu0 %773, %v631
        %v775 = vpop.permute.xlu0 %774
        %778 = vset.pattern.permute.xlu0 0
        %779 = vperm.xlu0 %778, %v632
        %v780 = vpop.permute.xlu0 %779
        %783 = vset.pattern.permute.xlu0 0
        %784 = vperm.xlu0 %783, %v633
        %v785 = vpop.permute.xlu0 %784
        %v788 = vsel %vm418, %v763, 0
        %v791 = vsel %vm418, %v764, 0
        %v794 = vsel %vm418, %v765, 0
        %v797 = vsel %vm418, %v766, 0
        %799 = vmatprep.subr.mxu0 0.0
        %800 = vmatpush1.msra.mxu0 %v758
        %801 = vmatprep.subr.mxu0 0.0
        %802 = vmatpush1.msra.mxu0 %v759
        %803 = vmatprep.subr.mxu0 0.0
        %804 = vmatpush1.msra.mxu0 %v760
        %805 = vmatprep.subr.mxu0 0.0
        %806 = vmatpush1.msra.mxu0 %v761
        %807 = vmatprep.subr.mxu0 0.0
        %808 = vmatpush1.msra.mxu0 0.0
        %809 = vmatprep.subr.mxu0 0.0
        %810 = vmatpush1.msra.mxu0 0.0
        %811 = vmatprep.subr.mxu0 0.0
        %812 = vmatpush1.msra.mxu0 0.0
        %813 = vmatprep.subr.mxu0 0.0
        %814 = vmatpush1.msra.mxu0 0.0
        %815 = vmatprep.subr.mxu0 0.0
        %816 = vmatpush1.msra.mxu0 0.0
        %817 = vmatprep.subr.mxu0 0.0
        %818 = vmatpush1.msra.mxu0 0.0
        %819 = vmatprep.subr.mxu0 0.0
        %820 = vmatpush1.msra.mxu0 0.0
        %821 = vmatprep.subr.mxu0 0.0
        %822 = vmatpush1.msra.mxu0 0.0
        %823 = vmatprep.subr.mxu0 0.0
        %824 = vmatpush1.msra.mxu0 0.0
        %825 = vmatprep.subr.mxu0 0.0
        %826 = vmatpush1.msra.mxu0 0.0
        %827 = vmatprep.subr.mxu0 0.0
        %828 = vmatpush1.msra.mxu0 0.0
        %829 = vmatprep.subr.mxu0 0.0
        %830 = vmatpush1.msra.mxu0 0.0
        %831 = vmatprep.subr.mxu0 0.0
        %832 = vmatpush1.msra.mxu0 0.0
        %833 = vmatprep.subr.mxu0 0.0
        %834 = vmatpush1.msra.mxu0 0.0
        %835 = vmatprep.subr.mxu0 0.0
        %836 = vmatpush1.msra.mxu0 0.0
        %837 = vmatprep.subr.mxu0 0.0
        %838 = vmatpush1.msra.mxu0 0.0
        %839 = vmatprep.subr.mxu0 0.0
        %840 = vmatpush1.msra.mxu0 0.0
        %841 = vmatprep.subr.mxu0 0.0
        %842 = vmatpush1.msra.mxu0 0.0
        %843 = vmatprep.subr.mxu0 0.0
        %844 = vmatpush1.msra.mxu0 0.0
        %845 = vmatprep.subr.mxu0 0.0
        %846 = vmatpush1.msra.mxu0 0.0
        %847 = vmatprep.subr.mxu0 0.0
        %848 = vmatpush1.msra.mxu0 0.0
        %849 = vmatprep.subr.mxu0 0.0
        %850 = vmatpush1.msra.mxu0 0.0
        %851 = vmatprep.subr.mxu0 0.0
        %852 = vmatpush1.msra.mxu0 0.0
        %853 = vmatprep.subr.mxu0 0.0
        %854 = vmatpush1.msra.mxu0 0.0
        %855 = vmatprep.subr.mxu0 0.0
        %856 = vmatpush1.msra.mxu0 0.0
        %857 = vmatprep.subr.mxu0 0.0
        %858 = vmatpush1.msra.mxu0 0.0
        %859 = vmatprep.subr.mxu0 0.0
        %860 = vmatpush1.msra.mxu0 0.0
        %861 = vmatprep.subr.mxu0 0.0
        %862 = vmatpush1.msra.mxu0 0.0
        %863 = vmatprep.mubr.f32.mxu0 0.0
        %864 = vmatmul.mubr.f32.gmra.mrb[0].mxu0 %v788
        %v865 = vpop.f32.mrb[0].mxu0
        %v866 = vadd.f32 %v770, %v865
        %v867 = vpop.f32.mrb[0].mxu0
        %868 = vmatprep.mubr.f32.mxu0 0.0
        %869 = vmatmul.mubr.f32.gmra.mrb[0].mxu0 %v791
        %v870 = vpop.f32.mrb[0].mxu0
        %v871 = vadd.f32 %v775, %v870
        %v872 = vpop.f32.mrb[0].mxu0
        %873 = vmatprep.mubr.f32.mxu0 0.0
        %874 = vmatmul.mubr.f32.gmra.mrb[0].mxu0 %v794
        %v875 = vpop.f32.mrb[0].mxu0
        %v876 = vadd.f32 %v780, %v875
        %v877 = vpop.f32.mrb[0].mxu0
        %878 = vmatprep.mubr.f32.mxu0 0.0
        %879 = vmatmul.mubr.f32.gmra.mrb[0].mxu0 %v797
        %v880 = vpop.f32.mrb[0].mxu0
        %v881 = vadd.f32 %v785, %v880
        %v882 = vpop.f32.mrb[0].mxu0
        %883 = vdwg.mxu0
        %v884 = vtanh.pop %v866
        %v885 = vtanh.pop %v871
        %v886 = vtanh.pop %v876
        %v887 = vtanh.pop %v881
        %s888 = scalar_lea.vmem %s3, 16
        %v889 = vld [vmem:[%s888] sm:$0xff]
        %v890 = vld [vmem:[%s888 + $0x8] sm:$0xff]
        %892 = vset.pattern.permute.xlu0 0
        %893 = vperm.xlu0 %892, %v634
        %v894 = vpop.permute.xlu0 %893
        %897 = vset.pattern.permute.xlu0 0
        %898 = vperm.xlu0 %897, %v635
        %v899 = vpop.permute.xlu0 %898
        %v902 = vsel %vm418, %v889, 0
        %v905 = vsel %vm418, %v890, 0
        %907 = vmatprep.subr.mxu0 0.0
        %908 = vmatpush1.msra.mxu0 %v884
        %909 = vmatprep.subr.mxu0 0.0
        %910 = vmatpush1.msra.mxu0 %v885
        %911 = vmatprep.subr.mxu0 0.0
        %912 = vmatpush1.msra.mxu0 %v886
        %913 = vmatprep.subr.mxu0 0.0
        %914 = vmatpush1.msra.mxu0 %v887
        %915 = vmatprep.subr.mxu0 0.0
        %916 = vmatpush1.msra.mxu0 0.0
        %917 = vmatprep.subr.mxu0 0.0
        %918 = vmatpush1.msra.mxu0 0.0
        %919 = vmatprep.subr.mxu0 0.0
        %920 = vmatpush1.msra.mxu0 0.0
        %921 = vmatprep.subr.mxu0 0.0
        %922 = vmatpush1.msra.mxu0 0.0
        %923 = vmatprep.subr.mxu0 0.0
        %924 = vmatpush1.msra.mxu0 0.0
        %925 = vmatprep.subr.mxu0 0.0
        %926 = vmatpush1.msra.mxu0 0.0
        %927 = vmatprep.subr.mxu0 0.0
        %928 = vmatpush1.msra.mxu0 0.0
        %929 = vmatprep.subr.mxu0 0.0
        %930 = vmatpush1.msra.mxu0 0.0
        %931 = vmatprep.subr.mxu0 0.0
        %932 = vmatpush1.msra.mxu0 0.0
        %933 = vmatprep.subr.mxu0 0.0
        %934 = vmatpush1.msra.mxu0 0.0
        %935 = vmatprep.subr.mxu0 0.0
        %936 = vmatpush1.msra.mxu0 0.0
        %937 = vmatprep.subr.mxu0 0.0
        %938 = vmatpush1.msra.mxu0 0.0
        %939 = vmatprep.subr.mxu0 0.0
        %940 = vmatpush1.msra.mxu0 0.0
        %941 = vmatprep.subr.mxu0 0.0
        %942 = vmatpush1.msra.mxu0 0.0
        %943 = vmatprep.subr.mxu0 0.0
        %944 = vmatpush1.msra.mxu0 0.0
        %945 = vmatprep.subr.mxu0 0.0
        %946 = vmatpush1.msra.mxu0 0.0
        %947 = vmatprep.subr.mxu0 0.0
        %948 = vmatpush1.msra.mxu0 0.0
        %949 = vmatprep.subr.mxu0 0.0
        %950 = vmatpush1.msra.mxu0 0.0
        %951 = vmatprep.subr.mxu0 0.0
        %952 = vmatpush1.msra.mxu0 0.0
        %953 = vmatprep.subr.mxu0 0.0
        %954 = vmatpush1.msra.mxu0 0.0
        %955 = vmatprep.subr.mxu0 0.0
        %956 = vmatpush1.msra.mxu0 0.0
        %957 = vmatprep.subr.mxu0 0.0
        %958 = vmatpush1.msra.mxu0 0.0
        %959 = vmatprep.subr.mxu0 0.0
        %960 = vmatpush1.msra.mxu0 0.0
        %961 = vmatprep.subr.mxu0 0.0
        %962 = vmatpush1.msra.mxu0 0.0
        %963 = vmatprep.subr.mxu0 0.0
        %964 = vmatpush1.msra.mxu0 0.0
        %965 = vmatprep.subr.mxu0 0.0
        %966 = vmatpush1.msra.mxu0 0.0
        %967 = vmatprep.subr.mxu0 0.0
        %968 = vmatpush1.msra.mxu0 0.0
        %969 = vmatprep.subr.mxu0 0.0
        %970 = vmatpush1.msra.mxu0 0.0
        %971 = vmatprep.mubr.f32.mxu0 0.0
        %972 = vmatmul.mubr.f32.gmra.mrb[0].mxu0 %v902
        %v973 = vpop.f32.mrb[0].mxu0
        %v974 = vadd.f32 %v894, %v973
        %v975 = vpop.f32.mrb[0].mxu0
        %976 = vmatprep.mubr.f32.mxu0 0.0
        %977 = vmatmul.mubr.f32.gmra.mrb[0].mxu0 %v905
        %v978 = vpop.f32.mrb[0].mxu0
        %v979 = vadd.f32 %v899, %v978
        %v980 = vpop.f32.mrb[0].mxu0
        %981 = vdwg.mxu0
        %v982 = vsub.f32 %v617, %v974
        %v983 = vsub.f32 0.0, %v979
        %v984 = vmul.f32 %v983, 1.442695
        %v985 = vpow.pop %v984
        %v986 = vmul.f32 %v982, %v985
        %v987 = vrot.slane %v979, 4
        %v988 = vadd.f32 %v979, %v987
        %v989 = vrot.slane %v988, 2
        %v990 = vadd.f32 %v988, %v989
        %v991 = vrot.slane %v990, 1
        %v992 = vadd.f32 %v990, %v991
        %v993 = vadd.f32 %v624, %v992
        %s994 = scalar_lea.vmem %s4, 160
        %v995 = vld [vmem:[%s994] sm:$0xff]
        %v996 = vld [vmem:[%s994 + $0x8] sm:$0xff]
        %v997 = vld [vmem:[%s994 + $0x10] sm:$0xff]
        %v998 = vld [vmem:[%s994 + $0x18] sm:$0xff]
        %v999 = vld [vmem:[%s994 + $0x20] sm:$0xff]
        %v1000 = vld [vmem:[%s994 + $0x28] sm:$0xff]
        %v1001 = vld [vmem:[%s994 + $0x30] sm:$0xff]
        %v1002 = vld [vmem:[%s994 + $0x38] sm:$0xff]
        %v1003 = vld [vmem:[%s994 + $0x40] sm:$0xff]
        %v1004 = vld [vmem:[%s994 + $0x48] sm:$0xff]
        %s1005 = scalar_lea.vmem %s1, 64
        %v1006 = vld [vmem:[%s1005] sm:$0xff]
        %v1007 = vld [vmem:[%s1005 + $0x8] sm:$0xff]
        %v1008 = vld [vmem:[%s1005 + $0x10] sm:$0xff]
        %v1009 = vld [vmem:[%s1005 + $0x18] sm:$0xff]
        %1011 = vset.pattern.permute.xlu0 0
        %1012 = vperm.xlu0 %1011, %v995
        %v1013 = vpop.permute.xlu0 %1012
        %1016 = vset.pattern.permute.xlu0 0
        %1017 = vperm.xlu0 %1016, %v996
        %v1018 = vpop.permute.xlu0 %1017
        %1021 = vset.pattern.permute.xlu0 0
        %1022 = vperm.xlu0 %1021, %v997
        %v1023 = vpop.permute.xlu0 %1022
        %1026 = vset.pattern.permute.xlu0 0
        %1027 = vperm.xlu0 %1026, %v998
        %v1028 = vpop.permute.xlu0 %1027
        %v1031 = vsel %vm292, %v1006, 0
        %v1034 = vsel %vm292, %v1007, 0
        %v1037 = vsel %vm292, %v1008, 0
        %v1040 = vsel %vm292, %v1009, 0
        %1042 = vmatprep.subr.mxu0 0.0
        %1043 = vmatpush1.msra.mxu0 %v986
        %1044 = vmatprep.subr.mxu0 0.0
        %1045 = vmatpush1.msra.mxu0 0.0
        %1046 = vmatprep.subr.mxu0 0.0
        %1047 = vmatpush1.msra.mxu0 0.0
        %1048 = vmatprep.subr.mxu0 0.0
        %1049 = vmatpush1.msra.mxu0 0.0
        %1050 = vmatprep.subr.mxu0 0.0
        %1051 = vmatpush1.msra.mxu0 0.0
        %1052 = vmatprep.subr.mxu0 0.0
        %1053 = vmatpush1.msra.mxu0 0.0
        %1054 = vmatprep.subr.mxu0 0.0
        %1055 = vmatpush1.msra.mxu0 0.0
        %1056 = vmatprep.subr.mxu0 0.0
        %1057 = vmatpush1.msra.mxu0 0.0
        %1058 = vmatprep.subr.mxu0 0.0
        %1059 = vmatpush1.msra.mxu0 0.0
        %1060 = vmatprep.subr.mxu0 0.0
        %1061 = vmatpush1.msra.mxu0 0.0
        %1062 = vmatprep.subr.mxu0 0.0
        %1063 = vmatpush1.msra.mxu0 0.0
        %1064 = vmatprep.subr.mxu0 0.0
        %1065 = vmatpush1.msra.mxu0 0.0
        %1066 = vmatprep.subr.mxu0 0.0
        %1067 = vmatpush1.msra.mxu0 0.0
        %1068 = vmatprep.subr.mxu0 0.0
        %1069 = vmatpush1.msra.mxu0 0.0
        %1070 = vmatprep.subr.mxu0 0.0
        %1071 = vmatpush1.msra.mxu0 0.0
        %1072 = vmatprep.subr.mxu0 0.0
        %1073 = vmatpush1.msra.mxu0 0.0
        %1074 = vmatprep.subr.mxu0 0.0
        %1075 = vmatpush1.msra.mxu0 0.0
        %1076 = vmatprep.subr.mxu0 0.0
        %1077 = vmatpush1.msra.mxu0 0.0
        %1078 = vmatprep.subr.mxu0 0.0
        %1079 = vmatpush1.msra.mxu0 0.0
        %1080 = vmatprep.subr.mxu0 0.0
        %1081 = vmatpush1.msra.mxu0 0.0
        %1082 = vmatprep.subr.mxu0 0.0
        %1083 = vmatpush1.msra.mxu0 0.0
        %1084 = vmatprep.subr.mxu0 0.0
        %1085 = vmatpush1.msra.mxu0 0.0
        %1086 = vmatprep.subr.mxu0 0.0
        %1087 = vmatpush1.msra.mxu0 0.0
        %1088 = vmatprep.subr.mxu0 0.0
        %1089 = vmatpush1.msra.mxu0 0.0
        %1090 = vmatprep.subr.mxu0 0.0
        %1091 = vmatpush1.msra.mxu0 0.0
        %1092 = vmatprep.subr.mxu0 0.0
        %1093 = vmatpush1.msra.mxu0 0.0
        %1094 = vmatprep.subr.mxu0 0.0
        %1095 = vmatpush1.msra.mxu0 0.0
        %1096 = vmatprep.subr.mxu0 0.0
        %1097 = vmatpush1.msra.mxu0 0.0
        %1098 = vmatprep.subr.mxu0 0.0
        %1099 = vmatpush1.msra.mxu0 0.0
        %1100 = vmatprep.subr.mxu0 0.0
        %1101 = vmatpush1.msra.mxu0 0.0
        %1102 = vmatprep.subr.mxu0 0.0
        %1103 = vmatpush1.msra.mxu0 0.0
        %1104 = vmatprep.subr.mxu0 0.0
        %1105 = vmatpush1.msra.mxu0 0.0
        %1106 = vmatprep.mubr.f32.mxu0 0.0
        %1107 = vmatmul.mubr.f32.gmra.mrb[0].mxu0 %v1031
        %v1108 = vpop.f32.mrb[0].mxu0
        %v1109 = vadd.f32 %v1013, %v1108
        %v1110 = vpop.f32.mrb[0].mxu0
        %1111 = vmatprep.mubr.f32.mxu0 0.0
        %1112 = vmatmul.mubr.f32.gmra.mrb[0].mxu0 %v1034
        %v1113 = vpop.f32.mrb[0].mxu0
        %v1114 = vadd.f32 %v1018, %v1113
        %v1115 = vpop.f32.mrb[0].mxu0
        %1116 = vmatprep.mubr.f32.mxu0 0.0
        %1117 = vmatmul.mubr.f32.gmra.mrb[0].mxu0 %v1037
        %v1118 = vpop.f32.mrb[0].mxu0
        %v1119 = vadd.f32 %v1023, %v1118
        %v1120 = vpop.f32.mrb[0].mxu0
        %1121 = vmatprep.mubr.f32.mxu0 0.0
        %1122 = vmatmul.mubr.f32.gmra.mrb[0].mxu0 %v1040
        %v1123 = vpop.f32.mrb[0].mxu0
        %v1124 = vadd.f32 %v1028, %v1123
        %v1125 = vpop.f32.mrb[0].mxu0
        %1126 = vdwg.mxu0
        %v1127 = vtanh.pop %v1109
        %v1128 = vtanh.pop %v1114
        %v1129 = vtanh.pop %v1119
        %v1130 = vtanh.pop %v1124
        %s1131 = scalar_lea.vmem %s2, 64
        %v1132 = vld [vmem:[%s1131] sm:$0xff]
        %v1133 = vld [vmem:[%s1131 + $0x8] sm:$0xff]
        %v1134 = vld [vmem:[%s1131 + $0x10] sm:$0xff]
        %v1135 = vld [vmem:[%s1131 + $0x18] sm:$0xff]
        %1137 = vset.pattern.permute.xlu0 0
        %1138 = vperm.xlu0 %1137, %v999
        %v1139 = vpop.permute.xlu0 %1138
        %1142 = vset.pattern.permute.xlu0 0
        %1143 = vperm.xlu0 %1142, %v1000
        %v1144 = vpop.permute.xlu0 %1143
        %1147 = vset.pattern.permute.xlu0 0
        %1148 = vperm.xlu0 %1147, %v1001
        %v1149 = vpop.permute.xlu0 %1148
        %1152 = vset.pattern.permute.xlu0 0
        %1153 = vperm.xlu0 %1152, %v1002
        %v1154 = vpop.permute.xlu0 %1153
        %v1157 = vsel %vm418, %v1132, 0
        %v1160 = vsel %vm418, %v1133, 0
        %v1163 = vsel %vm418, %v1134, 0
        %v1166 = vsel %vm418, %v1135, 0
        %1168 = vmatprep.subr.mxu0 0.0
        %1169 = vmatpush1.msra.mxu0 %v1127
        %1170 = vmatprep.subr.mxu0 0.0
        %1171 = vmatpush1.msra.mxu0 %v1128
        %1172 = vmatprep.subr.mxu0 0.0
        %1173 = vmatpush1.msra.mxu0 %v1129
        %1174 = vmatprep.subr.mxu0 0.0
        %1175 = vmatpush1.msra.mxu0 %v1130
        %1176 = vmatprep.subr.mxu0 0.0
        %1177 = vmatpush1.msra.mxu0 0.0
        %1178 = vmatprep.subr.mxu0 0.0
        %1179 = vmatpush1.msra.mxu0 0.0
        %1180 = vmatprep.subr.mxu0 0.0
        %1181 = vmatpush1.msra.mxu0 0.0
        %1182 = vmatprep.subr.mxu0 0.0
        %1183 = vmatpush1.msra.mxu0 0.0
        %1184 = vmatprep.subr.mxu0 0.0
        %1185 = vmatpush1.msra.mxu0 0.0
        %1186 = vmatprep.subr.mxu0 0.0
        %1187 = vmatpush1.msra.mxu0 0.0
        %1188 = vmatprep.subr.mxu0 0.0
        %1189 = vmatpush1.msra.mxu0 0.0
        %1190 = vmatprep.subr.mxu0 0.0
        %1191 = vmatpush1.msra.mxu0 0.0
        %1192 = vmatprep.subr.mxu0 0.0
        %1193 = vmatpush1.msra.mxu0 0.0
        %1194 = vmatprep.subr.mxu0 0.0
        %1195 = vmatpush1.msra.mxu0 0.0
        %1196 = vmatprep.subr.mxu0 0.0
        %1197 = vmatpush1.msra.mxu0 0.0
        %1198 = vmatprep.subr.mxu0 0.0
        %1199 = vmatpush1.msra.mxu0 0.0
        %1200 = vmatprep.subr.mxu0 0.0
        %1201 = vmatpush1.msra.mxu0 0.0
        %1202 = vmatprep.subr.mxu0 0.0
        %1203 = vmatpush1.msra.mxu0 0.0
        %1204 = vmatprep.subr.mxu0 0.0
        %1205 = vmatpush1.msra.mxu0 0.0
        %1206 = vmatprep.subr.mxu0 0.0
        %1207 = vmatpush1.msra.mxu0 0.0
        %1208 = vmatprep.subr.mxu0 0.0
        %1209 = vmatpush1.msra.mxu0 0.0
        %1210 = vmatprep.subr.mxu0 0.0
        %1211 = vmatpush1.msra.mxu0 0.0
        %1212 = vmatprep.subr.mxu0 0.0
        %1213 = vmatpush1.msra.mxu0 0.0
        %1214 = vmatprep.subr.mxu0 0.0
        %1215 = vmatpush1.msra.mxu0 0.0
        %1216 = vmatprep.subr.mxu0 0.0
        %1217 = vmatpush1.msra.mxu0 0.0
        %1218 = vmatprep.subr.mxu0 0.0
        %1219 = vmatpush1.msra.mxu0 0.0
        %1220 = vmatprep.subr.mxu0 0.0
        %1221 = vmatpush1.msra.mxu0 0.0
        %1222 = vmatprep.subr.mxu0 0.0
        %1223 = vmatpush1.msra.mxu0 0.0
        %1224 = vmatprep.subr.mxu0 0.0
        %1225 = vmatpush1.msra.mxu0 0.0
        %1226 = vmatprep.subr.mxu0 0.0
        %1227 = vmatpush1.msra.mxu0 0.0
        %1228 = vmatprep.subr.mxu0 0.0
        %1229 = vmatpush1.msra.mxu0 0.0
        %1230 = vmatprep.subr.mxu0 0.0
        %1231 = vmatpush1.msra.mxu0 0.0
        %1232 = vmatprep.mubr.f32.mxu0 0.0
        %1233 = vmatmul.mubr.f32.gmra.mrb[0].mxu0 %v1157
        %v1234 = vpop.f32.mrb[0].mxu0
        %v1235 = vadd.f32 %v1139, %v1234
        %v1236 = vpop.f32.mrb[0].mxu0
        %1237 = vmatprep.mubr.f32.mxu0 0.0
        %1238 = vmatmul.mubr.f32.gmra.mrb[0].mxu0 %v1160
        %v1239 = vpop.f32.mrb[0].mxu0
        %v1240 = vadd.f32 %v1144, %v1239
        %v1241 = vpop.f32.mrb[0].mxu0
        %1242 = vmatprep.mubr.f32.mxu0 0.0
        %1243 = vmatmul.mubr.f32.gmra.mrb[0].mxu0 %v1163
        %v1244 = vpop.f32.mrb[0].mxu0
        %v1245 = vadd.f32 %v1149, %v1244
        %v1246 = vpop.f32.mrb[0].mxu0
        %1247 = vmatprep.mubr.f32.mxu0 0.0
        %1248 = vmatmul.mubr.f32.gmra.mrb[0].mxu0 %v1166
        %v1249 = vpop.f32.mrb[0].mxu0
        %v1250 = vadd.f32 %v1154, %v1249
        %v1251 = vpop.f32.mrb[0].mxu0
        %1252 = vdwg.mxu0
        %v1253 = vtanh.pop %v1235
        %v1254 = vtanh.pop %v1240
        %v1255 = vtanh.pop %v1245
        %v1256 = vtanh.pop %v1250
        %s1257 = scalar_lea.vmem %s3, 32
        %v1258 = vld [vmem:[%s1257] sm:$0xff]
        %v1259 = vld [vmem:[%s1257 + $0x8] sm:$0xff]
        %1261 = vset.pattern.permute.xlu0 0
        %1262 = vperm.xlu0 %1261, %v1003
        %v1263 = vpop.permute.xlu0 %1262
        %1266 = vset.pattern.permute.xlu0 0
        %1267 = vperm.xlu0 %1266, %v1004
        %v1268 = vpop.permute.xlu0 %1267
        %v1271 = vsel %vm418, %v1258, 0
        %v1274 = vsel %vm418, %v1259, 0
        %1276 = vmatprep.subr.mxu0 0.0
        %1277 = vmatpush1.msra.mxu0 %v1253
        %1278 = vmatprep.subr.mxu0 0.0
        %1279 = vmatpush1.msra.mxu0 %v1254
        %1280 = vmatprep.subr.mxu0 0.0
        %1281 = vmatpush1.msra.mxu0 %v1255
        %1282 = vmatprep.subr.mxu0 0.0
        %1283 = vmatpush1.msra.mxu0 %v1256
        %1284 = vmatprep.subr.mxu0 0.0
        %1285 = vmatpush1.msra.mxu0 0.0
        %1286 = vmatprep.subr.mxu0 0.0
        %1287 = vmatpush1.msra.mxu0 0.0
        %1288 = vmatprep.subr.mxu0 0.0
        %1289 = vmatpush1.msra.mxu0 0.0
        %1290 = vmatprep.subr.mxu0 0.0
        %1291 = vmatpush1.msra.mxu0 0.0
        %1292 = vmatprep.subr.mxu0 0.0
        %1293 = vmatpush1.msra.mxu0 0.0
        %1294 = vmatprep.subr.mxu0 0.0
        %1295 = vmatpush1.msra.mxu0 0.0
        %1296 = vmatprep.subr.mxu0 0.0
        %1297 = vmatpush1.msra.mxu0 0.0
        %1298 = vmatprep.subr.mxu0 0.0
        %1299 = vmatpush1.msra.mxu0 0.0
        %1300 = vmatprep.subr.mxu0 0.0
        %1301 = vmatpush1.msra.mxu0 0.0
        %1302 = vmatprep.subr.mxu0 0.0
        %1303 = vmatpush1.msra.mxu0 0.0
        %1304 = vmatprep.subr.mxu0 0.0
        %1305 = vmatpush1.msra.mxu0 0.0
        %1306 = vmatprep.subr.mxu0 0.0
        %1307 = vmatpush1.msra.mxu0 0.0
        %1308 = vmatprep.subr.mxu0 0.0
        %1309 = vmatpush1.msra.mxu0 0.0
        %1310 = vmatprep.subr.mxu0 0.0
        %1311 = vmatpush1.msra.mxu0 0.0
        %1312 = vmatprep.subr.mxu0 0.0
        %1313 = vmatpush1.msra.mxu0 0.0
        %1314 = vmatprep.subr.mxu0 0.0
        %1315 = vmatpush1.msra.mxu0 0.0
        %1316 = vmatprep.subr.mxu0 0.0
        %1317 = vmatpush1.msra.mxu0 0.0
        %1318 = vmatprep.subr.mxu0 0.0
        %1319 = vmatpush1.msra.mxu0 0.0
        %1320 = vmatprep.subr.mxu0 0.0
        %1321 = vmatpush1.msra.mxu0 0.0
        %1322 = vmatprep.subr.mxu0 0.0
        %1323 = vmatpush1.msra.mxu0 0.0
        %1324 = vmatprep.subr.mxu0 0.0
        %1325 = vmatpush1.msra.mxu0 0.0
        %1326 = vmatprep.subr.mxu0 0.0
        %1327 = vmatpush1.msra.mxu0 0.0
        %1328 = vmatprep.subr.mxu0 0.0
        %1329 = vmatpush1.msra.mxu0 0.0
        %1330 = vmatprep.subr.mxu0 0.0
        %1331 = vmatpush1.msra.mxu0 0.0
        %1332 = vmatprep.subr.mxu0 0.0
        %1333 = vmatpush1.msra.mxu0 0.0
        %1334 = vmatprep.subr.mxu0 0.0
        %1335 = vmatpush1.msra.mxu0 0.0
        %1336 = vmatprep.subr.mxu0 0.0
        %1337 = vmatpush1.msra.mxu0 0.0
        %1338 = vmatprep.subr.mxu0 0.0
        %1339 = vmatpush1.msra.mxu0 0.0
        %1340 = vmatprep.mubr.f32.mxu0 0.0
        %1341 = vmatmul.mubr.f32.gmra.mrb[0].mxu0 %v1271
        %v1342 = vpop.f32.mrb[0].mxu0
        %v1343 = vadd.f32 %v1263, %v1342
        %v1344 = vpop.f32.mrb[0].mxu0
        %1345 = vmatprep.mubr.f32.mxu0 0.0
        %1346 = vmatmul.mubr.f32.gmra.mrb[0].mxu0 %v1274
        %v1347 = vpop.f32.mrb[0].mxu0
        %v1348 = vadd.f32 %v1268, %v1347
        %v1349 = vpop.f32.mrb[0].mxu0
        %1350 = vdwg.mxu0
        %v1351 = vsub.f32 %v986, %v1343
        %v1352 = vsub.f32 0.0, %v1348
        %v1353 = vmul.f32 %v1352, 1.442695
        %v1354 = vpow.pop %v1353
        %v1355 = vmul.f32 %v1351, %v1354
        %v1356 = vrot.slane %v1348, 4
        %v1357 = vadd.f32 %v1348, %v1356
        %v1358 = vrot.slane %v1357, 2
        %v1359 = vadd.f32 %v1357, %v1358
        %v1360 = vrot.slane %v1359, 1
        %v1361 = vadd.f32 %v1359, %v1360
        %v1362 = vadd.f32 %v993, %v1361
        %1363 = vst [vmem:[%s246] sm:$0xff] %v1355
        %1364 = vst [vmem:[%s252] sm:$0x1] %v1362
        %s1365 = sand.u32 %s142, 1
        %s1366 = scalar_lea.sflag [#allocation3], %s1365
        %s1367 = sand.u32 %s142, 1
        %s1368 = smul.addr %s1367, 8
        %s1369 = scalar_lea.vmem [#allocation2], %s1368
        %s1370 = sand.u32 %s168, 1
        %s1371 = scalar_lea.sflag [#allocation5], %s1370
        %s1372 = sand.u32 %s168, 1
        %s1373 = scalar_lea.vmem [#allocation4], %s1372
        // Predicated region
        $region41: #{tpu_custom_call.1} parent=39 // pred_check
          %p1374 = pneg %p152
        $region42: #{tpu_custom_call.1} parent=39 // pred_check_branch
          %1376 = sbr.rel (%p1374) target = $region44
        $region43: #{tpu_custom_call.1} parent=39 // pred_region
          %s1378 = ssub.s32 128, 128
          %1379 = vsyncadd %s1366, %s1378
          %s1380 = smul.addr %s24, 128
          %s1381 = scalar_lea.hbm %s5, %s1380
          %s1383 = sshll.u32 %s1369, 4
          %s1384 = int_to_ptr.vmem [resolvable:$true] %s1383
          %1386 = dma.vmem_to_hbm [thread:$0]  %s1384, 128, %s1381, %s1366
        $region44: #{tpu_custom_call.1} parent=39 // pred_fallthru
          _
        // Predicated region
        $region45: #{tpu_custom_call.1} parent=39 // pred_check
          %p1387 = pneg %p178
        $region46: #{tpu_custom_call.1} parent=39 // pred_check_branch
          %1389 = sbr.rel (%p1387) target = $region48
        $region47: #{tpu_custom_call.1} parent=39 // pred_region
          %s1391 = ssub.s32 16, 16
          %1392 = vsyncadd %s1371, %s1391
          %s1393 = smul.addr %s24, 16
          %s1394 = scalar_lea.hbm %s6, %s1393
          %s1396 = sshll.u32 %s1373, 4
          %s1397 = int_to_ptr.vmem [resolvable:$true] %s1396
          %1399 = dma.vmem_to_hbm [thread:$0]  %s1397, 16, %s1394, %s1371
        $region48: #{tpu_custom_call.1} parent=39 // pred_fallthru
          _
      $region40: #{tpu_custom_call.1} parent=5 // pred_fallthru
        _
      %p1400 = scmp.le.s32.totalorder 2, %s19
      // Predicated region
      $region49: #{tpu_custom_call.1} parent=5 // pred_check
        %p1401 = pneg %p1400
      $region50: #{tpu_custom_call.1} parent=5 // pred_check_branch
        %1403 = sbr.rel (%p1401) target = $region52
      $region51: #{tpu_custom_call.1} parent=5 // pred_region
        %s1404 = ssub.s32 %s19, 2
        // Predicated region
        $region53: #{tpu_custom_call.1} parent=51 // pred_check
          %p1405 = pneg %p158
        $region54: #{tpu_custom_call.1} parent=51 // pred_check_branch
          %1407 = sbr.rel (%p1405) target = $region56
        $region55: #{tpu_custom_call.1} parent=51 // pred_region
          %s1408 = sand.u32 %s143, 1
          %s1409 = scalar_lea.sflag [#allocation3], %s1408
          %s1410 = sand.u32 %s143, 1
          %s1411 = smul.addr %s1410, 8
          %s1412 = scalar_lea.vmem [#allocation2], %s1411
          %1413 = dma.done %s1409, 128
        $region56: #{tpu_custom_call.1} parent=51 // pred_fallthru
          _
        // Predicated region
        $region57: #{tpu_custom_call.1} parent=51 // pred_check
          %p1414 = pneg %p184
        $region58: #{tpu_custom_call.1} parent=51 // pred_check_branch
          %1416 = sbr.rel (%p1414) target = $region60
        $region59: #{tpu_custom_call.1} parent=51 // pred_region
          %s1417 = sand.u32 %s169, 1
          %s1418 = scalar_lea.sflag [#allocation5], %s1417
          %s1419 = sand.u32 %s169, 1
          %s1420 = scalar_lea.vmem [#allocation4], %s1419
          %1421 = dma.done %s1418, 16
        $region60: #{tpu_custom_call.1} parent=51 // pred_fallthru
          _
      $region52: #{tpu_custom_call.1} parent=5 // pred_fallthru
        _
    $region6: #{tpu_custom_call.1} parent=1 // loop_footer
      %s23 = sadd.s32 1, %s19
    $region7: #{tpu_custom_call.1} parent=1 // loop_footer_branch
      %18 = sbr.rel target = $region3
    $region8: #{tpu_custom_call.1} parent=1 // loop_exit
      _
    %1422 = vsyncpa [#allocation3], 1
    %s1423 = scalar_lea.sflag [#allocation3], 1
    %1424 = vsyncpa %s1423, 1
    %1425 = vsyncpa [#allocation5], 1
    %s1426 = scalar_lea.sflag [#allocation5], 1
    %1427 = vsyncpa %s1426, 1

</llo_original>
